<compile_context>
chip_gen: v5e
topology: v5e:2x2
jax: 0.10.0
libtpu: 0.0.40
codegen_flags: <defaults>
</compile_context>

<pallas_src>
import math

import numpy as np
import jax
import jax.numpy as jnp
from jax import lax
from jax.experimental import pallas as pl
from jax.experimental.pallas import tpu as pltpu


# ----------------------------------------------------------------------------------
# fused kernel: one grid step == one batch element, full sequence
# ----------------------------------------------------------------------------------
def _dp_fused_kernel(xp_ref, mask_ref,
                     w1_ref, b1_ref, g1_ref, be1_ref,
                     w2_ref, b2_ref, g2_ref, be2_ref,
                     wp_ref, bp_ref,
                     o_ref, hpad_ref):
    # xp_ref   : (T + 2*p, C_in) bf16 -- (x * x_mask) pre-padded along T with zeros
    # mask_ref : (T, 1)          f32
    # w1_ref   : (K, C_in, F)    bf16 ; w2_ref: (K, F, F) bf16
    # b*/g*/be*: (1, F)          f32  ; wp_ref: (1, F) f32 ; bp_ref: (1, 1) f32
    # o_ref    : (T, 1)          f32
    # hpad_ref : (T + 2*p, F)    bf16 VMEM scratch (conv2 halo buffer)
    T = o_ref.shape[0]
    K1 = w1_ref.shape[0]
    K2 = w2_ref.shape[0]
    p2 = K2 // 2
    F = w1_ref.shape[2]

    mask = mask_ref[...]                                          # (T, 1) f32

    # ---- conv1 (+bias) + ReLU + channel LayerNorm -------------------------------
    acc1 = jnp.zeros((T, F), jnp.float32)
    for k in range(K1):                                           # K shifted matmuls
        acc1 += jnp.dot(xp_ref[pl.ds(k, T), :], w1_ref[k],
                        preferred_element_type=jnp.float32)
    y1 = jnp.maximum(acc1 + b1_ref[...], 0.0)
    mu1 = jnp.mean(y1, axis=-1, keepdims=True)
    var1 = jnp.mean(jnp.square(y1 - mu1), axis=-1, keepdims=True)
    h1 = (y1 - mu1) * lax.rsqrt(var1 + 1e-5) * g1_ref[...] + be1_ref[...]
    h1 = (h1 * mask).astype(hpad_ref.dtype)                       # mask before conv2

    # ---- stage masked h1 into the zero-padded scratch (conv2 halo) --------------
    hpad_ref[...] = jnp.zeros_like(hpad_ref)
    hpad_ref[pl.ds(p2, T), :] = h1

    # ---- conv2 (+bias) + ReLU + channel LayerNorm -------------------------------
    acc2 = jnp.zeros((T, F), jnp.float32)
    for k in range(K2):
        acc2 += jnp.dot(hpad_ref[pl.ds(k, T), :], w2_ref[k],
                        preferred_element_type=jnp.float32)
    y2 = jnp.maximum(acc2 + b2_ref[...], 0.0)
    mu2 = jnp.mean(y2, axis=-1, keepdims=True)
    var2 = jnp.mean(jnp.square(y2 - mu2), axis=-1, keepdims=True)
    h2 = (y2 - mu2) * lax.rsqrt(var2 + 1e-5) * g2_ref[...] + be2_ref[...]
    h2 = h2 * mask                                                # mask before proj

    # ---- 1x1 projection to a single channel (VPU mul + XLU lane-reduce) ---------
    out = jnp.sum(h2 * wp_ref[...], axis=-1, keepdims=True) + bp_ref[...]
    o_ref[...] = out * mask                                       # final mask


# ----------------------------------------------------------------------------------
# wrapper
# ----------------------------------------------------------------------------------
def duration_predictor_pallas(x, x_mask, params, kernel_size):
    """x: (B, C_in, T) f32, x_mask: (B, 1, T) f32 -> (B, 1, T) f32."""
    B, C_in, T = x.shape
    K = kernel_size
    p = K // 2
    F = params["w1"].shape[2]
    Tpad = T + 2 * p

    # NWC layout; mask then zero-pad the conv1 halo once (tiny, done one time).
    x_nwc = (x * x_mask).transpose(0, 2, 1)                       # (B, T, C_in)
    xp = jnp.pad(x_nwc, ((0, 0), (p, p), (0, 0))).astype(jnp.bfloat16)
    mask = x_mask.transpose(0, 2, 1).astype(jnp.float32)          # (B, T, 1)

    vec = pl.BlockSpec((1, F), lambda b: (0, 0))
    out = pl.pallas_call(
        _dp_fused_kernel,
        out_shape=jax.ShapeDtypeStruct((B, T, 1), jnp.float32),
        grid=(B,),
        in_specs=[
            pl.BlockSpec((pl.Squeezed(), Tpad, C_in), lambda b: (b, 0, 0)),  # xp
            pl.BlockSpec((pl.Squeezed(), T, 1), lambda b: (b, 0, 0)),        # mask
            pl.BlockSpec((K, C_in, F), lambda b: (0, 0, 0)),                 # w1
            vec, vec, vec,                                                   # b1,g1,be1
            pl.BlockSpec((K, F, F), lambda b: (0, 0, 0)),                    # w2
            vec, vec, vec,                                                   # b2,g2,be2
            vec,                                                             # wp
            pl.BlockSpec((1, 1), lambda b: (0, 0)),                          # bp
        ],
        out_specs=pl.BlockSpec((pl.Squeezed(), T, 1), lambda b: (b, 0, 0)),
        scratch_shapes=[pltpu.VMEM((Tpad, F), jnp.bfloat16)],
        compiler_params=pltpu.CompilerParams(dimension_semantics=("parallel",)),
    )(xp, mask,
      params["w1"], params["b1"], params["g1"], params["be1"],
      params["w2"], params["b2"], params["g2"], params["be2"],
      params["wp"], params["bp"])
    return out.transpose(0, 2, 1)                                 # (B, 1, T)


# ----------------------------------------------------------------------------------
# pure-JAX reference (same bf16 matmul precision) for a self-check
# ----------------------------------------------------------------------------------
def duration_predictor_ref(x, x_mask, params, kernel_size):
    K = kernel_size
    p = K // 2

    def conv(h_nwc, w_kcf, b):
        T = h_nwc.shape[1]
        hp = jnp.pad(h_nwc, ((0, 0), (p, p), (0, 0))).astype(jnp.bfloat16)
        acc = jnp.zeros(h_nwc.shape[:2] + (w_kcf.shape[2],), jnp.float32)
        for k in range(K):
            acc = acc + jnp.einsum("btc,cf->btf", hp[:, k:k + T], w_kcf[k],
                                   preferred_element_type=jnp.float32)
        return acc + b

    def ln(y, g, be):
        mu = jnp.mean(y, -1, keepdims=True)
        v = jnp.mean(jnp.square(y - mu), -1, keepdims=True)
        return (y - mu) * lax.rsqrt(v + 1e-5) * g + be

    mask = x_mask.transpose(0, 2, 1).astype(jnp.float32)          # (B, T, 1)
    h = (x * x_mask).transpose(0, 2, 1)                           # (B, T, C)
    h = ln(jax.nn.relu(conv(h, params["w1"], params["b1"])),
           params["g1"], params["be1"]) * mask
    h = ln(jax.nn.relu(conv(h, params["w2"], params["b2"])),
           params["g2"], params["be2"]) * mask
    out = jnp.sum(h * params["wp"], axis=-1, keepdims=True) + params["bp"][0, 0]
    out = out * mask
    return out.transpose(0, 2, 1)


# ----------------------------------------------------------------------------------
# deterministic synthetic parameters (PyTorch Conv1d layout re-packed once)
# ----------------------------------------------------------------------------------
def init_params(key, in_channels, filter_channels, kernel_size):
    ks = jax.random.split(key, 8)
    # torch layout (C_out, C_in, K) -> fused layout (K, C_in, C_out), bf16 for the MXU
    w1_t = jax.random.normal(ks[0], (filter_channels, in_channels, kernel_size),
                             jnp.float32) / math.sqrt(in_channels * kernel_size)
    w2_t = jax.random.normal(ks[1], (filter_channels, filter_channels, kernel_size),
                             jnp.float32) / math.sqrt(filter_channels * kernel_size)
    wp_t = jax.random.normal(ks[2], (1, filter_channels, 1),
                             jnp.float32) / math.sqrt(filter_channels)
    F = filter_channels
    return dict(
        w1=jnp.transpose(w1_t, (2, 1, 0)).astype(jnp.bfloat16),   # (K, C_in, F)
        b1=(0.1 * jax.random.normal(ks[3], (1, F))).astype(jnp.float32),
        g1=(1.0 + 0.1 * jax.random.normal(ks[4], (1, F))).astype(jnp.float32),
        be1=(0.1 * jax.random.normal(ks[5], (1, F))).astype(jnp.float32),
        w2=jnp.transpose(w2_t, (2, 1, 0)).astype(jnp.bfloat16),   # (K, F, F)
        b2=(0.1 * jax.random.normal(ks[6], (1, F))).astype(jnp.float32),
        g2=(1.0 + 0.1 * jax.random.normal(ks[7], (1, F))).astype(jnp.float32),
        be2=jnp.zeros((1, F), jnp.float32),
        wp=wp_t[:, :, 0].astype(jnp.float32),                     # (1, F)
        bp=jnp.full((1, 1), 0.05, jnp.float32),
    )


# ----------------------------------------------------------------------------------
# main
# ----------------------------------------------------------------------------------
if __name__ == "__main__":
    B, C_in, F, K, T = 2, 32, 256, 3, 16

    key = jax.random.PRNGKey(0)
    kx, kp = jax.random.split(key)
    x = jax.random.normal(kx, (B, C_in, T), jnp.float32)
    lengths = jnp.array([T, 11], jnp.int32)
    x_mask = (jnp.arange(T)[None, :] < lengths[:, None]).astype(jnp.float32)[:, None, :]

    params = init_params(kp, C_in, F, K)

    fwd = jax.jit(lambda xx, mm: duration_predictor_pallas(xx, mm, params, K))
    out = jax.block_until_ready(fwd(x, x_mask))

    ref = duration_predictor_ref(x, x_mask, params, K)
    assert out.shape == (B, 1, T)
    np.testing.assert_allclose(np.asarray(out, np.float32),
                               np.asarray(ref, np.float32),
                               atol=1e-2, rtol=1e-2)
    print("KERNEL_OK")
</pallas_src>

<mosaic_0001>
module attributes {stable_mosaic.version = 11 : i64} {
  func.func @_dp_fused_kernel(%arg0: i32, %arg1: memref<1x18x32xbf16, #tpu.memory_space<vmem>>, %arg2: memref<1x16x1xf32, #tpu.memory_space<vmem>>, %arg3: memref<3x32x256xbf16, #tpu.memory_space<vmem>>, %arg4: memref<1x256xf32, #tpu.memory_space<vmem>>, %arg5: memref<1x256xf32, #tpu.memory_space<vmem>>, %arg6: memref<1x256xf32, #tpu.memory_space<vmem>>, %arg7: memref<3x256x256xbf16, #tpu.memory_space<vmem>>, %arg8: memref<1x256xf32, #tpu.memory_space<vmem>>, %arg9: memref<1x256xf32, #tpu.memory_space<vmem>>, %arg10: memref<1x256xf32, #tpu.memory_space<vmem>>, %arg11: memref<1x256xf32, #tpu.memory_space<vmem>>, %arg12: memref<1x1xf32, #tpu.memory_space<vmem>>, %arg13: memref<1x16x1xf32, #tpu.memory_space<vmem>>, %arg14: memref<18x256xbf16, #tpu.memory_space<vmem>>) attributes {dimension_semantics = [#tpu.dimension_semantics<parallel>], iteration_bounds = array<i64: 2>, scalar_prefetch = 0 : i64, scratch_operands = 1 : i64, tpu.core_type = #tpu.core_type<tc>, window_params = [{transform_indices = @transform_0, window_bounds = array<i64: 1, 18, 32>}, {transform_indices = @transform_1, window_bounds = array<i64: 1, 16, 1>}, {pipeline_mode = #tpu.pipeline_mode<synchronous>, transform_indices = @transform_2, window_bounds = array<i64: 3, 32, 256>}, {pipeline_mode = #tpu.pipeline_mode<synchronous>, transform_indices = @transform_3, window_bounds = array<i64: 1, 256>}, {pipeline_mode = #tpu.pipeline_mode<synchronous>, transform_indices = @transform_4, window_bounds = array<i64: 1, 256>}, {pipeline_mode = #tpu.pipeline_mode<synchronous>, transform_indices = @transform_5, window_bounds = array<i64: 1, 256>}, {pipeline_mode = #tpu.pipeline_mode<synchronous>, transform_indices = @transform_6, window_bounds = array<i64: 3, 256, 256>}, {pipeline_mode = #tpu.pipeline_mode<synchronous>, transform_indices = @transform_7, window_bounds = array<i64: 1, 256>}, {pipeline_mode = #tpu.pipeline_mode<synchronous>, transform_indices = @transform_8, window_bounds = array<i64: 1, 256>}, {pipeline_mode = #tpu.pipeline_mode<synchronous>, transform_indices = @transform_9, window_bounds = array<i64: 1, 256>}, {pipeline_mode = #tpu.pipeline_mode<synchronous>, transform_indices = @transform_10, window_bounds = array<i64: 1, 256>}, {pipeline_mode = #tpu.pipeline_mode<synchronous>, transform_indices = @transform_11, window_bounds = array<i64: 1, 1>}, {transform_indices = @transform_12, window_bounds = array<i64: 1, 16, 1>}]} {
    %c0 = arith.constant 0 : index
    %c0_0 = arith.constant 0 : index
    %c0_1 = arith.constant 0 : index
    %0 = vector.load %arg2[%c0, %c0_0, %c0_1] : memref<1x16x1xf32, #tpu.memory_space<vmem>>, vector<1x16x1xf32>
    %1 = vector.shape_cast %0 : vector<1x16x1xf32> to vector<16x1xf32>
    %cst = arith.constant 0.000000e+00 : f32
    %2 = vector.broadcast %cst : f32 to vector<16x256xf32>
    %c0_2 = arith.constant 0 : index
    %c0_3 = arith.constant 0 : index
    %c0_4 = arith.constant 0 : index
    %3 = vector.load %arg1[%c0_2, %c0_3, %c0_4] : memref<1x18x32xbf16, #tpu.memory_space<vmem>>, vector<1x16x32xbf16>
    %4 = vector.shape_cast %3 : vector<1x16x32xbf16> to vector<16x32xbf16>
    %c0_5 = arith.constant 0 : index
    %c0_6 = arith.constant 0 : index
    %c0_7 = arith.constant 0 : index
    %5 = vector.load %arg3[%c0_5, %c0_6, %c0_7] : memref<3x32x256xbf16, #tpu.memory_space<vmem>>, vector<1x32x256xbf16>
    %6 = vector.shape_cast %5 : vector<1x32x256xbf16> to vector<32x256xbf16>
    %cst_8 = arith.constant dense<0.000000e+00> : vector<16x256xf32>
    %7 = tpu.matmul %4, %6, %cst_8 {dimension_numbers = #tpu.dot_dimension_numbers<[1], [0], [0], [1], [0, 0, 1, 1], [], []>} : vector<16x32xbf16>, vector<32x256xbf16>, vector<16x256xf32> -> vector<16x256xf32>
    %8 = arith.addf %2, %7 : vector<16x256xf32>
    %c0_9 = arith.constant 0 : index
    %c1 = arith.constant 1 : index
    %c0_10 = arith.constant 0 : index
    %9 = vector.load %arg1[%c0_9, %c1, %c0_10] : memref<1x18x32xbf16, #tpu.memory_space<vmem>>, vector<1x16x32xbf16>
    %10 = vector.shape_cast %9 : vector<1x16x32xbf16> to vector<16x32xbf16>
    %c1_11 = arith.constant 1 : index
    %c0_12 = arith.constant 0 : index
    %c0_13 = arith.constant 0 : index
    %11 = vector.load %arg3[%c1_11, %c0_12, %c0_13] : memref<3x32x256xbf16, #tpu.memory_space<vmem>>, vector<1x32x256xbf16>
    %12 = vector.shape_cast %11 : vector<1x32x256xbf16> to vector<32x256xbf16>
    %cst_14 = arith.constant dense<0.000000e+00> : vector<16x256xf32>
    %13 = tpu.matmul %10, %12, %cst_14 {dimension_numbers = #tpu.dot_dimension_numbers<[1], [0], [0], [1], [0, 0, 1, 1], [], []>} : vector<16x32xbf16>, vector<32x256xbf16>, vector<16x256xf32> -> vector<16x256xf32>
    %14 = arith.addf %8, %13 : vector<16x256xf32>
    %c0_15 = arith.constant 0 : index
    %c2 = arith.constant 2 : index
    %c0_16 = arith.constant 0 : index
    %15 = vector.load %arg1[%c0_15, %c2, %c0_16] : memref<1x18x32xbf16, #tpu.memory_space<vmem>>, vector<1x16x32xbf16>
    %16 = vector.shape_cast %15 : vector<1x16x32xbf16> to vector<16x32xbf16>
    %c2_17 = arith.constant 2 : index
    %c0_18 = arith.constant 0 : index
    %c0_19 = arith.constant 0 : index
    %17 = vector.load %arg3[%c2_17, %c0_18, %c0_19] : memref<3x32x256xbf16, #tpu.memory_space<vmem>>, vector<1x32x256xbf16>
    %18 = vector.shape_cast %17 : vector<1x32x256xbf16> to vector<32x256xbf16>
    %cst_20 = arith.constant dense<0.000000e+00> : vector<16x256xf32>
    %19 = tpu.matmul %16, %18, %cst_20 {dimension_numbers = #tpu.dot_dimension_numbers<[1], [0], [0], [1], [0, 0, 1, 1], [], []>} : vector<16x32xbf16>, vector<32x256xbf16>, vector<16x256xf32> -> vector<16x256xf32>
    %20 = arith.addf %14, %19 : vector<16x256xf32>
    %c0_21 = arith.constant 0 : index
    %c0_22 = arith.constant 0 : index
    %21 = vector.load %arg4[%c0_21, %c0_22] : memref<1x256xf32, #tpu.memory_space<vmem>>, vector<1x256xf32>
    %22 = vector.broadcast %21 : vector<1x256xf32> to vector<16x256xf32>
    %23 = arith.addf %20, %22 : vector<16x256xf32>
    %cst_23 = arith.constant 0.000000e+00 : f32
    %24 = vector.broadcast %cst_23 : f32 to vector<16x256xf32>
    %25 = arith.maximumf %23, %24 : vector<16x256xf32>
    %cst_24 = arith.constant dense<0.000000e+00> : vector<16xf32>
    %26 = vector.multi_reduction <add>, %25, %cst_24 [1] : vector<16x256xf32> to vector<16xf32>
    %27 = vector.shape_cast %26 : vector<16xf32> to vector<16x1xf32>
    %cst_25 = arith.constant 2.560000e+02 : f32
    %28 = vector.broadcast %cst_25 : f32 to vector<16x1xf32>
    %29 = arith.divf %27, %28 : vector<16x1xf32>
    %30 = vector.broadcast %29 : vector<16x1xf32> to vector<16x256xf32>
    %31 = arith.subf %25, %30 : vector<16x256xf32>
    %32 = arith.mulf %31, %31 : vector<16x256xf32>
    %cst_26 = arith.constant dense<0.000000e+00> : vector<16xf32>
    %33 = vector.multi_reduction <add>, %32, %cst_26 [1] : vector<16x256xf32> to vector<16xf32>
    %34 = vector.shape_cast %33 : vector<16xf32> to vector<16x1xf32>
    %cst_27 = arith.constant 2.560000e+02 : f32
    %35 = vector.broadcast %cst_27 : f32 to vector<16x1xf32>
    %36 = arith.divf %34, %35 : vector<16x1xf32>
    %37 = vector.broadcast %29 : vector<16x1xf32> to vector<16x256xf32>
    %38 = arith.subf %25, %37 : vector<16x256xf32>
    %cst_28 = arith.constant 9.99999974E-6 : f32
    %39 = vector.broadcast %cst_28 : f32 to vector<16x1xf32>
    %40 = arith.addf %36, %39 : vector<16x1xf32>
    %41 = math.rsqrt %40 : vector<16x1xf32>
    %42 = vector.broadcast %41 : vector<16x1xf32> to vector<16x256xf32>
    %43 = arith.mulf %38, %42 : vector<16x256xf32>
    %c0_29 = arith.constant 0 : index
    %c0_30 = arith.constant 0 : index
    %44 = vector.load %arg5[%c0_29, %c0_30] : memref<1x256xf32, #tpu.memory_space<vmem>>, vector<1x256xf32>
    %45 = vector.broadcast %44 : vector<1x256xf32> to vector<16x256xf32>
    %46 = arith.mulf %43, %45 : vector<16x256xf32>
    %c0_31 = arith.constant 0 : index
    %c0_32 = arith.constant 0 : index
    %47 = vector.load %arg6[%c0_31, %c0_32] : memref<1x256xf32, #tpu.memory_space<vmem>>, vector<1x256xf32>
    %48 = vector.broadcast %47 : vector<1x256xf32> to vector<16x256xf32>
    %49 = arith.addf %46, %48 : vector<16x256xf32>
    %50 = vector.broadcast %1 : vector<16x1xf32> to vector<16x256xf32>
    %51 = arith.mulf %49, %50 : vector<16x256xf32>
    %52 = arith.truncf %51 : vector<16x256xf32> to vector<16x256xbf16>
    %cst_33 = arith.constant 0.000000e+00 : bf16
    %53 = vector.broadcast %cst_33 : bf16 to vector<18x256xbf16>
    %c0_34 = arith.constant 0 : index
    %c0_35 = arith.constant 0 : index
    %54 = vector.load %arg14[%c0_34, %c0_35] : memref<18x256xbf16, #tpu.memory_space<vmem>>, vector<18x256xbf16>
    tpu.vector_store %arg14[%c0_34, %c0_35], %53 {strides = array<i32>} : memref<18x256xbf16, #tpu.memory_space<vmem>>, vector<18x256xbf16>,
    %c1_36 = arith.constant 1 : index
    %c0_37 = arith.constant 0 : index
    %55 = vector.load %arg14[%c1_36, %c0_37] : memref<18x256xbf16, #tpu.memory_space<vmem>>, vector<16x256xbf16>
    tpu.vector_store %arg14[%c1_36, %c0_37], %52 {strides = array<i32>} : memref<18x256xbf16, #tpu.memory_space<vmem>>, vector<16x256xbf16>,
    %cst_38 = arith.constant 0.000000e+00 : f32
    %56 = vector.broadcast %cst_38 : f32 to vector<16x256xf32>
    %c0_39 = arith.constant 0 : index
    %c0_40 = arith.constant 0 : index
    %57 = vector.load %arg14[%c0_39, %c0_40] : memref<18x256xbf16, #tpu.memory_space<vmem>>, vector<16x256xbf16>
    %c0_41 = arith.constant 0 : index
    %c0_42 = arith.constant 0 : index
    %c0_43 = arith.constant 0 : index
    %58 = vector.load %arg7[%c0_41, %c0_42, %c0_43] : memref<3x256x256xbf16, #tpu.memory_space<vmem>>, vector<1x256x256xbf16>
    %59 = vector.shape_cast %58 : vector<1x256x256xbf16> to vector<256x256xbf16>
    %cst_44 = arith.constant dense<0.000000e+00> : vector<16x256xf32>
    %60 = tpu.matmul %57, %59, %cst_44 {dimension_numbers = #tpu.dot_dimension_numbers<[1], [0], [0], [1], [0, 0, 1, 1], [], []>} : vector<16x256xbf16>, vector<256x256xbf16>, vector<16x256xf32> -> vector<16x256xf32>
    %61 = arith.addf %56, %60 : vector<16x256xf32>
    %c1_45 = arith.constant 1 : index
    %c0_46 = arith.constant 0 : index
    %62 = vector.load %arg14[%c1_45, %c0_46] : memref<18x256xbf16, #tpu.memory_space<vmem>>, vector<16x256xbf16>
    %c1_47 = arith.constant 1 : index
    %c0_48 = arith.constant 0 : index
    %c0_49 = arith.constant 0 : index
    %63 = vector.load %arg7[%c1_47, %c0_48, %c0_49] : memref<3x256x256xbf16, #tpu.memory_space<vmem>>, vector<1x256x256xbf16>
    %64 = vector.shape_cast %63 : vector<1x256x256xbf16> to vector<256x256xbf16>
    %cst_50 = arith.constant dense<0.000000e+00> : vector<16x256xf32>
    %65 = tpu.matmul %62, %64, %cst_50 {dimension_numbers = #tpu.dot_dimension_numbers<[1], [0], [0], [1], [0, 0, 1, 1], [], []>} : vector<16x256xbf16>, vector<256x256xbf16>, vector<16x256xf32> -> vector<16x256xf32>
    %66 = arith.addf %61, %65 : vector<16x256xf32>
    %c2_51 = arith.constant 2 : index
    %c0_52 = arith.constant 0 : index
    %67 = vector.load %arg14[%c2_51, %c0_52] : memref<18x256xbf16, #tpu.memory_space<vmem>>, vector<16x256xbf16>
    %c2_53 = arith.constant 2 : index
    %c0_54 = arith.constant 0 : index
    %c0_55 = arith.constant 0 : index
    %68 = vector.load %arg7[%c2_53, %c0_54, %c0_55] : memref<3x256x256xbf16, #tpu.memory_space<vmem>>, vector<1x256x256xbf16>
    %69 = vector.shape_cast %68 : vector<1x256x256xbf16> to vector<256x256xbf16>
    %cst_56 = arith.constant dense<0.000000e+00> : vector<16x256xf32>
    %70 = tpu.matmul %67, %69, %cst_56 {dimension_numbers = #tpu.dot_dimension_numbers<[1], [0], [0], [1], [0, 0, 1, 1], [], []>} : vector<16x256xbf16>, vector<256x256xbf16>, vector<16x256xf32> -> vector<16x256xf32>
    %71 = arith.addf %66, %70 : vector<16x256xf32>
    %c0_57 = arith.constant 0 : index
    %c0_58 = arith.constant 0 : index
    %72 = vector.load %arg8[%c0_57, %c0_58] : memref<1x256xf32, #tpu.memory_space<vmem>>, vector<1x256xf32>
    %73 = vector.broadcast %72 : vector<1x256xf32> to vector<16x256xf32>
    %74 = arith.addf %71, %73 : vector<16x256xf32>
    %cst_59 = arith.constant 0.000000e+00 : f32
    %75 = vector.broadcast %cst_59 : f32 to vector<16x256xf32>
    %76 = arith.maximumf %74, %75 : vector<16x256xf32>
    %cst_60 = arith.constant dense<0.000000e+00> : vector<16xf32>
    %77 = vector.multi_reduction <add>, %76, %cst_60 [1] : vector<16x256xf32> to vector<16xf32>
    %78 = vector.shape_cast %77 : vector<16xf32> to vector<16x1xf32>
    %cst_61 = arith.constant 2.560000e+02 : f32
    %79 = vector.broadcast %cst_61 : f32 to vector<16x1xf32>
    %80 = arith.divf %78, %79 : vector<16x1xf32>
    %81 = vector.broadcast %80 : vector<16x1xf32> to vector<16x256xf32>
    %82 = arith.subf %76, %81 : vector<16x256xf32>
    %83 = arith.mulf %82, %82 : vector<16x256xf32>
    %cst_62 = arith.constant dense<0.000000e+00> : vector<16xf32>
    %84 = vector.multi_reduction <add>, %83, %cst_62 [1] : vector<16x256xf32> to vector<16xf32>
    %85 = vector.shape_cast %84 : vector<16xf32> to vector<16x1xf32>
    %cst_63 = arith.constant 2.560000e+02 : f32
    %86 = vector.broadcast %cst_63 : f32 to vector<16x1xf32>
    %87 = arith.divf %85, %86 : vector<16x1xf32>
    %88 = vector.broadcast %80 : vector<16x1xf32> to vector<16x256xf32>
    %89 = arith.subf %76, %88 : vector<16x256xf32>
    %cst_64 = arith.constant 9.99999974E-6 : f32
    %90 = vector.broadcast %cst_64 : f32 to vector<16x1xf32>
    %91 = arith.addf %87, %90 : vector<16x1xf32>
    %92 = math.rsqrt %91 : vector<16x1xf32>
    %93 = vector.broadcast %92 : vector<16x1xf32> to vector<16x256xf32>
    %94 = arith.mulf %89, %93 : vector<16x256xf32>
    %c0_65 = arith.constant 0 : index
    %c0_66 = arith.constant 0 : index
    %95 = vector.load %arg9[%c0_65, %c0_66] : memref<1x256xf32, #tpu.memory_space<vmem>>, vector<1x256xf32>
    %96 = vector.broadcast %95 : vector<1x256xf32> to vector<16x256xf32>
    %97 = arith.mulf %94, %96 : vector<16x256xf32>
    %c0_67 = arith.constant 0 : index
    %c0_68 = arith.constant 0 : index
    %98 = vector.load %arg10[%c0_67, %c0_68] : memref<1x256xf32, #tpu.memory_space<vmem>>, vector<1x256xf32>
    %99 = vector.broadcast %98 : vector<1x256xf32> to vector<16x256xf32>
    %100 = arith.addf %97, %99 : vector<16x256xf32>
    %101 = vector.broadcast %1 : vector<16x1xf32> to vector<16x256xf32>
    %102 = arith.mulf %100, %101 : vector<16x256xf32>
    %c0_69 = arith.constant 0 : index
    %c0_70 = arith.constant 0 : index
    %103 = vector.load %arg11[%c0_69, %c0_70] : memref<1x256xf32, #tpu.memory_space<vmem>>, vector<1x256xf32>
    %104 = vector.broadcast %103 : vector<1x256xf32> to vector<16x256xf32>
    %105 = arith.mulf %102, %104 : vector<16x256xf32>
    %cst_71 = arith.constant dense<0.000000e+00> : vector<16xf32>
    %106 = vector.multi_reduction <add>, %105, %cst_71 [1] : vector<16x256xf32> to vector<16xf32>
    %107 = vector.shape_cast %106 : vector<16xf32> to vector<16x1xf32>
    %c0_72 = arith.constant 0 : index
    %c0_73 = arith.constant 0 : index
    %108 = vector.load %arg12[%c0_72, %c0_73] : memref<1x1xf32, #tpu.memory_space<vmem>>, vector<1x1xf32>
    %109 = vector.broadcast %108 : vector<1x1xf32> to vector<16x1xf32>
    %110 = arith.addf %107, %109 : vector<16x1xf32>
    %111 = arith.mulf %110, %1 : vector<16x1xf32>
    %c0_74 = arith.constant 0 : index
    %c0_75 = arith.constant 0 : index
    %c0_76 = arith.constant 0 : index
    %112 = vector.load %arg13[%c0_74, %c0_75, %c0_76] : memref<1x16x1xf32, #tpu.memory_space<vmem>>, vector<1x16x1xf32>
    %113 = vector.shape_cast %112 : vector<1x16x1xf32> to vector<16x1xf32>
    %114 = vector.shape_cast %111 : vector<16x1xf32> to vector<1x16x1xf32>
    tpu.vector_store %arg13[%c0_74, %c0_75, %c0_76], %114 {strides = array<i32>} : memref<1x16x1xf32, #tpu.memory_space<vmem>>, vector<1x16x1xf32>,
    return
  }
  func.func @transform_0(%arg0: i32) -> (i32, i32, i32) {
    %c0_i32 = arith.constant 0 : i32
    %c0_i32_0 = arith.constant 0 : i32
    %c0_i32_1 = arith.constant 0 : i32
    return %arg0, %c0_i32, %c0_i32_0 : i32, i32, i32
  }
  func.func @transform_1(%arg0: i32) -> (i32, i32, i32) {
    %c0_i32 = arith.constant 0 : i32
    %c0_i32_0 = arith.constant 0 : i32
    %c0_i32_1 = arith.constant 0 : i32
    return %arg0, %c0_i32, %c0_i32_0 : i32, i32, i32
  }
  func.func @transform_2(%arg0: i32) -> (i32, i32, i32) {
    %c0_i32 = arith.constant 0 : i32
    %c0_i32_0 = arith.constant 0 : i32
    %c0_i32_1 = arith.constant 0 : i32
    %c0_i32_2 = arith.constant 0 : i32
    return %c0_i32, %c0_i32_0, %c0_i32_1 : i32, i32, i32
  }
  func.func @transform_3(%arg0: i32) -> (i32, i32) {
    %c0_i32 = arith.constant 0 : i32
    %c0_i32_0 = arith.constant 0 : i32
    %c0_i32_1 = arith.constant 0 : i32
    return %c0_i32, %c0_i32_0 : i32, i32
  }
  func.func @transform_4(%arg0: i32) -> (i32, i32) {
    %c0_i32 = arith.constant 0 : i32
    %c0_i32_0 = arith.constant 0 : i32
    %c0_i32_1 = arith.constant 0 : i32
    return %c0_i32, %c0_i32_0 : i32, i32
  }
  func.func @transform_5(%arg0: i32) -> (i32, i32) {
    %c0_i32 = arith.constant 0 : i32
    %c0_i32_0 = arith.constant 0 : i32
    %c0_i32_1 = arith.constant 0 : i32
    return %c0_i32, %c0_i32_0 : i32, i32
  }
  func.func @transform_6(%arg0: i32) -> (i32, i32, i32) {
    %c0_i32 = arith.constant 0 : i32
    %c0_i32_0 = arith.constant 0 : i32
    %c0_i32_1 = arith.constant 0 : i32
    %c0_i32_2 = arith.constant 0 : i32
    return %c0_i32, %c0_i32_0, %c0_i32_1 : i32, i32, i32
  }
  func.func @transform_7(%arg0: i32) -> (i32, i32) {
    %c0_i32 = arith.constant 0 : i32
    %c0_i32_0 = arith.constant 0 : i32
    %c0_i32_1 = arith.constant 0 : i32
    return %c0_i32, %c0_i32_0 : i32, i32
  }
  func.func @transform_8(%arg0: i32) -> (i32, i32) {
    %c0_i32 = arith.constant 0 : i32
    %c0_i32_0 = arith.constant 0 : i32
    %c0_i32_1 = arith.constant 0 : i32
    return %c0_i32, %c0_i32_0 : i32, i32
  }
  func.func @transform_9(%arg0: i32) -> (i32, i32) {
    %c0_i32 = arith.constant 0 : i32
    %c0_i32_0 = arith.constant 0 : i32
    %c0_i32_1 = arith.constant 0 : i32
    return %c0_i32, %c0_i32_0 : i32, i32
  }
  func.func @transform_10(%arg0: i32) -> (i32, i32) {
    %c0_i32 = arith.constant 0 : i32
    %c0_i32_0 = arith.constant 0 : i32
    %c0_i32_1 = arith.constant 0 : i32
    return %c0_i32, %c0_i32_0 : i32, i32
  }
  func.func @transform_11(%arg0: i32) -> (i32, i32) {
    %c0_i32 = arith.constant 0 : i32
    %c0_i32_0 = arith.constant 0 : i32
    %c0_i32_1 = arith.constant 0 : i32
    return %c0_i32, %c0_i32_0 : i32, i32
  }
  func.func @transform_12(%arg0: i32) -> (i32, i32, i32) {
    %c0_i32 = arith.constant 0 : i32
    %c0_i32_0 = arith.constant 0 : i32
    %c0_i32_1 = arith.constant 0 : i32
    return %arg0, %c0_i32, %c0_i32_0 : i32, i32, i32
  }
}

</mosaic_0001>

<llo_original>
// kernel: _lambda_.1
$region0: #{_lambda_.1}
  #allocation0 [shape = 'u32[]', space=smem, size = 0x4, offset = 0x4, fixed_abs, tag = 'smem constant byte address 0x4 - core index']
  #allocation1 [shape = 'u32[72,128]{1,0:T(1,128)}', space=vmem, size = 0x9000, scoped, tag = 'internal scratch']
  #allocation2 [shape = 'bf16[18,256]{1,0:T(8,128)(2,1)}', space=vmem, size = 0x3000, scoped, tag = 'scratch operand']
  #allocation3 [shape = 'f32[1,1]{1,0:T(1,128)S(1)}', space=vmem, size = 0x200, scoped, tag = 'scoped memory for _lambda_.1']
  %s0 = inlined_call_operand.vmem [shape: bf16[2,18,32], index: 0, kind: input, shape index: {}]
  %s1 = inlined_call_operand.vmem [shape: f32[2,16,1], index: 1, kind: input, shape index: {}]
  %s2 = inlined_call_operand.vmem [shape: bf16[3,32,256], index: 2, kind: input, shape index: {}]
  %s3 = inlined_call_operand.vmem [shape: f32[1,256], index: 3, kind: input, shape index: {}]
  %s4 = inlined_call_operand.vmem [shape: f32[1,256], index: 4, kind: input, shape index: {}]
  %s5 = inlined_call_operand.vmem [shape: f32[1,256], index: 5, kind: input, shape index: {}]
  %s6 = inlined_call_operand.hbm [shape: bf16[3,256,256], index: 6, kind: input, shape index: {}]
  %s7 = inlined_call_operand.vmem [shape: f32[1,256], index: 7, kind: input, shape index: {}]
  %s8 = inlined_call_operand.vmem [shape: f32[1,256], index: 8, kind: input, shape index: {}]
  %s9 = inlined_call_operand.vmem [shape: f32[1,256], index: 9, kind: input, shape index: {}]
  %s10 = inlined_call_operand.vmem [shape: f32[1,256], index: 10, kind: input, shape index: {}]
  %s11 = inlined_call_operand.<no memory space> [shape: f32[1,1], index: 11, kind: input, shape index: {}]
  %s12 = inlined_call_operand.vmem [shape: f32[2,16,1], index: 12, kind: output, shape index: {}]
  %s13 = sld [smem:[#allocation0]]
  $region85: #{_lambda_.1} parent=0
    _
  %s15 = ssub.s32 1, %s13
  %s16 = scalar_select 0, %s15, %s13
  %v17 = vstv %s11
  %18 = vst [vmem:[#allocation3] sm:$0x1] %v17
  $region1: #{_lambda_.1} parent=0
    #allocation4 [shape = 'u8[393216]{0}', space=vmem, size = 0x60000, scoped, tag = 'input window, operand 6, single buffered']
    #allocation5 [shape = 's32[2]{0}', space=sflag, size = 0x8, scoped, tag = 'scoped memory for _lambda_.1']
    %19 = vsyncpa [#allocation5], 0
    loop: start=0, step=1, limit=4
    $region2: #{_lambda_.1} parent=1 // loop_pre_header
      _
    $region3: #{_lambda_.1} parent=1 // loop_header
      %s21 = sphi 0, %s25
      %p22 = scmp.ge.s32.totalorder %s21, 4
      %s31 = sphi 0, %s33
      %s34 = sphi 0, %s31
      %s35 = sphi 0, %s34
      %s51 = sphi 0, %s35
      %s57 = sphi 0, %s59
      %s60 = sphi 0, %s57
      %s61 = sphi 0, %s60
      %s77 = sphi 0, %s61
      %s81 = sphi 0, %s81
      %s83 = sphi 0, %s81
      %s84 = sphi 0, %s83
      %s98 = sphi 0, %s84
      %s102 = sphi 0, %s102
      %s104 = sphi 0, %s102
      %s105 = sphi 0, %s104
      %s119 = sphi 0, %s105
      %s123 = sphi 0, %s123
      %s125 = sphi 0, %s123
      %s126 = sphi 0, %s125
      %s140 = sphi 0, %s126
      %s144 = sphi 0, %s144
      %s146 = sphi 0, %s144
      %s147 = sphi 0, %s146
      %s161 = sphi 0, %s147
      %s165 = sphi 0, %s165
      %s167 = sphi 0, %s165
      %s168 = sphi 0, %s167
      %s182 = sphi 0, %s168
      %s186 = sphi 0, %s186
      %s188 = sphi 0, %s186
      %s189 = sphi 0, %s188
      %s203 = sphi 0, %s189
      %s207 = sphi 0, %s207
      %s209 = sphi 0, %s207
      %s210 = sphi 0, %s209
      %s224 = sphi 0, %s210
      %s228 = sphi 0, %s228
      %s230 = sphi 0, %s228
      %s231 = sphi 0, %s230
      %s245 = sphi 0, %s231
      %s249 = sphi 0, %s249
      %s251 = sphi 0, %s249
      %s252 = sphi 0, %s251
      %s266 = sphi 0, %s252
      %s270 = sphi 0, %s270
      %s272 = sphi 0, %s270
      %s273 = sphi 0, %s272
      %s287 = sphi 0, %s273
      %s293 = sphi 0, %s295
      %s296 = sphi 0, %s293
      %s297 = sphi 0, %s296
      %s313 = sphi 0, %s297
    $region4: #{_lambda_.1} parent=1 // loop_header_branch
      %24 = sbr.rel (%p22) target = $region8
    $region5: #{_lambda_.1} parent=1 // loop_body
      %s26 = ssub.s32 %s21, 1
      %s27 = ssub.s32 %s21, 2
      %s28 = sadd.s32 %s21, 1
      %s29 = ssub.s32 %s21, %s28
      %p30 = scmp.eq.s32.totalorder %s29, 0
      %s32 = sadd.s32 %s31, 1
      %s33 = scalar_select %p30, %s31, %s32
      %p36 = pneg %p30
      %p37 = scmp.eq.s32.totalorder %s21, 1
      %p38 = por %p36, %p37
      %p39 = scmp.ne.s32.totalorder %s31, %s34
      %p40 = scmp.eq.s32.totalorder %s21, 0
      %p41 = por %p39, %p40
      %p42 = scmp.ne.s32.totalorder %s31, %s34
      %p43 = scmp.eq.s32.totalorder %s26, 1
      %p44 = por %p42, %p43
      %p45 = scmp.ne.s32.totalorder %s34, %s35
      %p46 = scmp.eq.s32.totalorder %s26, 0
      %p47 = por %p45, %p46
      %p48 = scmp.ne.s32.totalorder %s34, %s35
      %p49 = scmp.eq.s32.totalorder %s27, 1
      %p50 = por %p48, %p49
      %p52 = scmp.ne.s32.totalorder %s35, %s51
      %p53 = scmp.eq.s32.totalorder %s27, 0
      %p54 = por %p52, %p53
      %s55 = ssub.s32 %s21, %s28
      %p56 = scmp.eq.s32.totalorder %s55, 0
      %s58 = sadd.s32 %s57, 1
      %s59 = scalar_select %p56, %s57, %s58
      %p62 = pneg %p56
      %p63 = scmp.eq.s32.totalorder %s21, 1
      %p64 = por %p62, %p63
      %p65 = scmp.ne.s32.totalorder %s57, %s60
      %p66 = scmp.eq.s32.totalorder %s21, 0
      %p67 = por %p65, %p66
      %p68 = scmp.ne.s32.totalorder %s57, %s60
      %p69 = scmp.eq.s32.totalorder %s26, 1
      %p70 = por %p68, %p69
      %p71 = scmp.ne.s32.totalorder %s60, %s61
      %p72 = scmp.eq.s32.totalorder %s26, 0
      %p73 = por %p71, %p72
      %p74 = scmp.ne.s32.totalorder %s60, %s61
      %p75 = scmp.eq.s32.totalorder %s27, 1
      %p76 = por %p74, %p75
      %p78 = scmp.ne.s32.totalorder %s61, %s77
      %p79 = scmp.eq.s32.totalorder %s27, 0
      %p80 = por %p78, %p79
      %s82 = sadd.s32 %s81, 1
      %p85 = scmp.eq.s32.totalorder %s21, 1
      %p86 = scmp.ne.s32.totalorder %s81, %s83
      %p87 = scmp.eq.s32.totalorder %s21, 0
      %p88 = por %p86, %p87
      %p89 = scmp.ne.s32.totalorder %s81, %s83
      %p90 = scmp.eq.s32.totalorder %s26, 1
      %p91 = por %p89, %p90
      %p92 = scmp.ne.s32.totalorder %s83, %s84
      %p93 = scmp.eq.s32.totalorder %s26, 0
      %p94 = por %p92, %p93
      %p95 = scmp.ne.s32.totalorder %s83, %s84
      %p96 = scmp.eq.s32.totalorder %s27, 1
      %p97 = por %p95, %p96
      %p99 = scmp.ne.s32.totalorder %s84, %s98
      %p100 = scmp.eq.s32.totalorder %s27, 0
      %p101 = por %p99, %p100
      %s103 = sadd.s32 %s102, 1
      %p106 = scmp.eq.s32.totalorder %s21, 1
      %p107 = scmp.ne.s32.totalorder %s102, %s104
      %p108 = scmp.eq.s32.totalorder %s21, 0
      %p109 = por %p107, %p108
      %p110 = scmp.ne.s32.totalorder %s102, %s104
      %p111 = scmp.eq.s32.totalorder %s26, 1
      %p112 = por %p110, %p111
      %p113 = scmp.ne.s32.totalorder %s104, %s105
      %p114 = scmp.eq.s32.totalorder %s26, 0
      %p115 = por %p113, %p114
      %p116 = scmp.ne.s32.totalorder %s104, %s105
      %p117 = scmp.eq.s32.totalorder %s27, 1
      %p118 = por %p116, %p117
      %p120 = scmp.ne.s32.totalorder %s105, %s119
      %p121 = scmp.eq.s32.totalorder %s27, 0
      %p122 = por %p120, %p121
      %s124 = sadd.s32 %s123, 1
      %p127 = scmp.eq.s32.totalorder %s21, 1
      %p128 = scmp.ne.s32.totalorder %s123, %s125
      %p129 = scmp.eq.s32.totalorder %s21, 0
      %p130 = por %p128, %p129
      %p131 = scmp.ne.s32.totalorder %s123, %s125
      %p132 = scmp.eq.s32.totalorder %s26, 1
      %p133 = por %p131, %p132
      %p134 = scmp.ne.s32.totalorder %s125, %s126
      %p135 = scmp.eq.s32.totalorder %s26, 0
      %p136 = por %p134, %p135
      %p137 = scmp.ne.s32.totalorder %s125, %s126
      %p138 = scmp.eq.s32.totalorder %s27, 1
      %p139 = por %p137, %p138
      %p141 = scmp.ne.s32.totalorder %s126, %s140
      %p142 = scmp.eq.s32.totalorder %s27, 0
      %p143 = por %p141, %p142
      %s145 = sadd.s32 %s144, 1
      %p148 = scmp.eq.s32.totalorder %s21, 1
      %p149 = scmp.ne.s32.totalorder %s144, %s146
      %p150 = scmp.eq.s32.totalorder %s21, 0
      %p151 = por %p149, %p150
      %p152 = scmp.ne.s32.totalorder %s144, %s146
      %p153 = scmp.eq.s32.totalorder %s26, 1
      %p154 = por %p152, %p153
      %p155 = scmp.ne.s32.totalorder %s146, %s147
      %p156 = scmp.eq.s32.totalorder %s26, 0
      %p157 = por %p155, %p156
      %p158 = scmp.ne.s32.totalorder %s146, %s147
      %p159 = scmp.eq.s32.totalorder %s27, 1
      %p160 = por %p158, %p159
      %p162 = scmp.ne.s32.totalorder %s147, %s161
      %p163 = scmp.eq.s32.totalorder %s27, 0
      %p164 = por %p162, %p163
      %s166 = sadd.s32 %s165, 1
      %p169 = scmp.eq.s32.totalorder %s21, 1
      %p170 = scmp.ne.s32.totalorder %s165, %s167
      %p171 = scmp.eq.s32.totalorder %s21, 0
      %p172 = por %p170, %p171
      %p173 = scmp.ne.s32.totalorder %s165, %s167
      %p174 = scmp.eq.s32.totalorder %s26, 1
      %p175 = por %p173, %p174
      %p176 = scmp.ne.s32.totalorder %s167, %s168
      %p177 = scmp.eq.s32.totalorder %s26, 0
      %p178 = por %p176, %p177
      %p179 = scmp.ne.s32.totalorder %s167, %s168
      %p180 = scmp.eq.s32.totalorder %s27, 1
      %p181 = por %p179, %p180
      %p183 = scmp.ne.s32.totalorder %s168, %s182
      %p184 = scmp.eq.s32.totalorder %s27, 0
      %p185 = por %p183, %p184
      %s187 = sadd.s32 %s186, 1
      %p190 = scmp.eq.s32.totalorder %s21, 1
      %p191 = scmp.ne.s32.totalorder %s186, %s188
      %p192 = scmp.eq.s32.totalorder %s21, 0
      %p193 = por %p191, %p192
      %p194 = scmp.ne.s32.totalorder %s186, %s188
      %p195 = scmp.eq.s32.totalorder %s26, 1
      %p196 = por %p194, %p195
      %p197 = scmp.ne.s32.totalorder %s188, %s189
      %p198 = scmp.eq.s32.totalorder %s26, 0
      %p199 = por %p197, %p198
      %p200 = scmp.ne.s32.totalorder %s188, %s189
      %p201 = scmp.eq.s32.totalorder %s27, 1
      %p202 = por %p200, %p201
      %p204 = scmp.ne.s32.totalorder %s189, %s203
      %p205 = scmp.eq.s32.totalorder %s27, 0
      %p206 = por %p204, %p205
      %s208 = sadd.s32 %s207, 1
      %p211 = scmp.eq.s32.totalorder %s21, 1
      %p212 = scmp.ne.s32.totalorder %s207, %s209
      %p213 = scmp.eq.s32.totalorder %s21, 0
      %p214 = por %p212, %p213
      %p215 = scmp.ne.s32.totalorder %s207, %s209
      %p216 = scmp.eq.s32.totalorder %s26, 1
      %p217 = por %p215, %p216
      %p218 = scmp.ne.s32.totalorder %s209, %s210
      %p219 = scmp.eq.s32.totalorder %s26, 0
      %p220 = por %p218, %p219
      %p221 = scmp.ne.s32.totalorder %s209, %s210
      %p222 = scmp.eq.s32.totalorder %s27, 1
      %p223 = por %p221, %p222
      %p225 = scmp.ne.s32.totalorder %s210, %s224
      %p226 = scmp.eq.s32.totalorder %s27, 0
      %p227 = por %p225, %p226
      %s229 = sadd.s32 %s228, 1
      %p232 = scmp.eq.s32.totalorder %s21, 1
      %p233 = scmp.ne.s32.totalorder %s228, %s230
      %p234 = scmp.eq.s32.totalorder %s21, 0
      %p235 = por %p233, %p234
      %p236 = scmp.ne.s32.totalorder %s228, %s230
      %p237 = scmp.eq.s32.totalorder %s26, 1
      %p238 = por %p236, %p237
      %p239 = scmp.ne.s32.totalorder %s230, %s231
      %p240 = scmp.eq.s32.totalorder %s26, 0
      %p241 = por %p239, %p240
      %p242 = scmp.ne.s32.totalorder %s230, %s231
      %p243 = scmp.eq.s32.totalorder %s27, 1
      %p244 = por %p242, %p243
      %p246 = scmp.ne.s32.totalorder %s231, %s245
      %p247 = scmp.eq.s32.totalorder %s27, 0
      %p248 = por %p246, %p247
      %s250 = sadd.s32 %s249, 1
      %p253 = scmp.eq.s32.totalorder %s21, 1
      %p254 = scmp.ne.s32.totalorder %s249, %s251
      %p255 = scmp.eq.s32.totalorder %s21, 0
      %p256 = por %p254, %p255
      %p257 = scmp.ne.s32.totalorder %s249, %s251
      %p258 = scmp.eq.s32.totalorder %s26, 1
      %p259 = por %p257, %p258
      %p260 = scmp.ne.s32.totalorder %s251, %s252
      %p261 = scmp.eq.s32.totalorder %s26, 0
      %p262 = por %p260, %p261
      %p263 = scmp.ne.s32.totalorder %s251, %s252
      %p264 = scmp.eq.s32.totalorder %s27, 1
      %p265 = por %p263, %p264
      %p267 = scmp.ne.s32.totalorder %s252, %s266
      %p268 = scmp.eq.s32.totalorder %s27, 0
      %p269 = por %p267, %p268
      %s271 = sadd.s32 %s270, 1
      %p274 = scmp.eq.s32.totalorder %s21, 1
      %p275 = scmp.ne.s32.totalorder %s270, %s272
      %p276 = scmp.eq.s32.totalorder %s21, 0
      %p277 = por %p275, %p276
      %p278 = scmp.ne.s32.totalorder %s270, %s272
      %p279 = scmp.eq.s32.totalorder %s26, 1
      %p280 = por %p278, %p279
      %p281 = scmp.ne.s32.totalorder %s272, %s273
      %p282 = scmp.eq.s32.totalorder %s26, 0
      %p283 = por %p281, %p282
      %p284 = scmp.ne.s32.totalorder %s272, %s273
      %p285 = scmp.eq.s32.totalorder %s27, 1
      %p286 = por %p284, %p285
      %p288 = scmp.ne.s32.totalorder %s273, %s287
      %p289 = scmp.eq.s32.totalorder %s27, 0
      %p290 = por %p288, %p289
      %s291 = ssub.s32 %s21, %s28
      %p292 = scmp.eq.s32.totalorder %s291, 0
      %s294 = sadd.s32 %s293, 1
      %s295 = scalar_select %p292, %s293, %s294
      %p298 = pneg %p292
      %p299 = scmp.eq.s32.totalorder %s21, 1
      %p300 = por %p298, %p299
      %p301 = scmp.ne.s32.totalorder %s293, %s296
      %p302 = scmp.eq.s32.totalorder %s21, 0
      %p303 = por %p301, %p302
      %p304 = scmp.ne.s32.totalorder %s293, %s296
      %p305 = scmp.eq.s32.totalorder %s26, 1
      %p306 = por %p304, %p305
      %p307 = scmp.ne.s32.totalorder %s296, %s297
      %p308 = scmp.eq.s32.totalorder %s26, 0
      %p309 = por %p307, %p308
      %p310 = scmp.ne.s32.totalorder %s296, %s297
      %p311 = scmp.eq.s32.totalorder %s27, 1
      %p312 = por %p310, %p311
      %p314 = scmp.ne.s32.totalorder %s297, %s313
      %p315 = scmp.eq.s32.totalorder %s27, 0
      %p316 = por %p314, %p315
      %p317 = scmp.le.s32.totalorder 1, %s21
      %p318 = scmp.lt.s32.totalorder %s21, 3
      %p319 = pnand %p317, %p318
      %p320 = pneg %p319
      // Predicated region
      $region9: #{_lambda_.1} parent=5 // pred_check
        _
      $region10: #{_lambda_.1} parent=5 // pred_check_branch
        %322 = sbr.rel (%p319) target = $region12
      $region11: #{_lambda_.1} parent=5 // pred_region
        %s323 = ssub.s32 %s21, 1
        // Predicated region
        $region13: #{_lambda_.1} parent=11 // pred_check
          %p324 = pneg %p94
        $region14: #{_lambda_.1} parent=11 // pred_check_branch
          %326 = sbr.rel (%p324) target = $region16
        $region15: #{_lambda_.1} parent=11 // pred_region
          _
        $region16: #{_lambda_.1} parent=11 // pred_fallthru
          _
        // Predicated region
        $region17: #{_lambda_.1} parent=11 // pred_check
          %p327 = pneg %p115
        $region18: #{_lambda_.1} parent=11 // pred_check_branch
          %329 = sbr.rel (%p327) target = $region20
        $region19: #{_lambda_.1} parent=11 // pred_region
          _
        $region20: #{_lambda_.1} parent=11 // pred_fallthru
          _
        // Predicated region
        $region21: #{_lambda_.1} parent=11 // pred_check
          %p330 = pneg %p136
        $region22: #{_lambda_.1} parent=11 // pred_check_branch
          %332 = sbr.rel (%p330) target = $region24
        $region23: #{_lambda_.1} parent=11 // pred_region
          _
        $region24: #{_lambda_.1} parent=11 // pred_fallthru
          _
        // Predicated region
        $region25: #{_lambda_.1} parent=11 // pred_check
          %p333 = pneg %p157
        $region26: #{_lambda_.1} parent=11 // pred_check_branch
          %335 = sbr.rel (%p333) target = $region28
        $region27: #{_lambda_.1} parent=11 // pred_region
          _
        $region28: #{_lambda_.1} parent=11 // pred_fallthru
          _
        // Predicated region
        $region29: #{_lambda_.1} parent=11 // pred_check
          %p336 = pneg %p178
        $region30: #{_lambda_.1} parent=11 // pred_check_branch
          %338 = sbr.rel (%p336) target = $region32
        $region31: #{_lambda_.1} parent=11 // pred_region
          %340 = vsyncadd [#allocation5], 0
          %s341 = sshll.u32 %s6, 4
          %s342 = int_to_ptr.hbm [resolvable:$true] %s341
          %s343 = sshll.u32 [#allocation4], 4
          %s344 = int_to_ptr.vmem [resolvable:$true] %s343
          %349 = dma.hbm_to_vmem [thread:$0]  %s342, 12288, %s344, [#allocation5], 128, 128, 8
        $region32: #{_lambda_.1} parent=11 // pred_fallthru
          _
        // Predicated region
        $region33: #{_lambda_.1} parent=11 // pred_check
          %p350 = pneg %p199
        $region34: #{_lambda_.1} parent=11 // pred_check_branch
          %352 = sbr.rel (%p350) target = $region36
        $region35: #{_lambda_.1} parent=11 // pred_region
          _
        $region36: #{_lambda_.1} parent=11 // pred_fallthru
          _
        // Predicated region
        $region37: #{_lambda_.1} parent=11 // pred_check
          %p353 = pneg %p220
        $region38: #{_lambda_.1} parent=11 // pred_check_branch
          %355 = sbr.rel (%p353) target = $region40
        $region39: #{_lambda_.1} parent=11 // pred_region
          _
        $region40: #{_lambda_.1} parent=11 // pred_fallthru
          _
        // Predicated region
        $region41: #{_lambda_.1} parent=11 // pred_check
          %p356 = pneg %p241
        $region42: #{_lambda_.1} parent=11 // pred_check_branch
          %358 = sbr.rel (%p356) target = $region44
        $region43: #{_lambda_.1} parent=11 // pred_region
          _
        $region44: #{_lambda_.1} parent=11 // pred_fallthru
          _
        // Predicated region
        $region45: #{_lambda_.1} parent=11 // pred_check
          %p359 = pneg %p262
        $region46: #{_lambda_.1} parent=11 // pred_check_branch
          %361 = sbr.rel (%p359) target = $region48
        $region47: #{_lambda_.1} parent=11 // pred_region
          _
        $region48: #{_lambda_.1} parent=11 // pred_fallthru
          _
        // Predicated region
        $region49: #{_lambda_.1} parent=11 // pred_check
          %p362 = pneg %p283
        $region50: #{_lambda_.1} parent=11 // pred_check_branch
          %364 = sbr.rel (%p362) target = $region52
        $region51: #{_lambda_.1} parent=11 // pred_region
          _
        $region52: #{_lambda_.1} parent=11 // pred_fallthru
          _
      $region12: #{_lambda_.1} parent=5 // pred_fallthru
        _
      %p365 = scmp.lt.s32.totalorder %s21, 2
      // Predicated region
      $region53: #{_lambda_.1} parent=5 // pred_check
        %p366 = pneg %p365
      $region54: #{_lambda_.1} parent=5 // pred_check_branch
        %368 = sbr.rel (%p366) target = $region56
      $region55: #{_lambda_.1} parent=5 // pred_region
        // Predicated region
        $region57: #{_lambda_.1} parent=55 // pred_check
          %p369 = pneg %p41
        $region58: #{_lambda_.1} parent=55 // pred_check_branch
          %371 = sbr.rel (%p369) target = $region60
        $region59: #{_lambda_.1} parent=55 // pred_region
          %p372 = scmp.lt.s32.totalorder %s21, 1
          %s373 = scalar_select %p372, %s21, 1
          %s374 = smul.addr %s373, 3
          %s375 = smul.addr %s374, 4
          %s376 = scalar_lea.vmem %s0, %s375
        $region60: #{_lambda_.1} parent=55 // pred_fallthru
          _
        // Predicated region
        $region61: #{_lambda_.1} parent=55 // pred_check
          %p377 = pneg %p67
        $region62: #{_lambda_.1} parent=55 // pred_check_branch
          %379 = sbr.rel (%p377) target = $region64
        $region63: #{_lambda_.1} parent=55 // pred_region
          %p380 = scmp.lt.s32.totalorder %s21, 1
          %s381 = scalar_select %p380, %s21, 1
          %s382 = smul.addr %s381, 2
          %s383 = smul.addr %s382, 8
          %s384 = scalar_lea.vmem %s1, %s383
        $region64: #{_lambda_.1} parent=55 // pred_fallthru
          _
      $region56: #{_lambda_.1} parent=5 // pred_fallthru
        _
      %p385 = scmp.le.s32.totalorder 1, %s21
      %p386 = scmp.lt.s32.totalorder %s21, 3
      %p387 = pnand %p385, %p386
      %p388 = pneg %p387
      // Predicated region
      $region65: #{_lambda_.1} parent=5 // pred_check
        _
      $region66: #{_lambda_.1} parent=5 // pred_check_branch
        %390 = sbr.rel (%p387) target = $region68
      $region67: #{_lambda_.1} parent=5 // pred_region
        %s391 = ssub.s32 %s21, 1
        // Predicated region
        $region69: #{_lambda_.1} parent=67 // pred_check
          %p392 = pneg %p178
        $region70: #{_lambda_.1} parent=67 // pred_check_branch
          %394 = sbr.rel (%p392) target = $region72
        $region71: #{_lambda_.1} parent=67 // pred_region
          %396 = dma.done [#allocation5], 12288
        $region72: #{_lambda_.1} parent=67 // pred_fallthru
          _
        %p397 = scmp.lt.s32.totalorder %s26, 1
        %s398 = scalar_select %p397, %s26, 1
        %s399 = smul.addr %s398, 3
        %s400 = smul.addr %s399, 4
        %s401 = scalar_lea.vmem %s0, %s400
        %p402 = pneg %p47
        %p403 = pneg %p44
        %p404 = scmp.lt.s32.totalorder %s26, 1
        %s405 = scalar_select %p404, %s26, 1
        %s406 = smul.addr %s405, 2
        %s407 = smul.addr %s406, 8
        %s408 = scalar_lea.vmem %s1, %s407
        %p409 = pneg %p73
        %p410 = pneg %p70
        %p411 = pneg %p94
        %p412 = pneg %p91
        %p413 = pneg %p115
        %p414 = pneg %p112
        %p415 = pneg %p136
        %p416 = pneg %p133
        %p417 = pneg %p157
        %p418 = pneg %p154
        %p419 = pneg %p178
        %p420 = pneg %p175
        %p421 = pneg %p199
        %p422 = pneg %p196
        %p423 = pneg %p220
        %p424 = pneg %p217
        %p425 = pneg %p241
        %p426 = pneg %p238
        %p427 = pneg %p262
        %p428 = pneg %p259
        %p429 = pneg %p283
        %p430 = pneg %p280
        %p431 = pneg %p309
        %p432 = pneg %p306
        %p433 = scmp.lt.s32.totalorder %s26, 1
        %s434 = scalar_select %p433, %s26, 1
        %s435 = smul.addr %s434, 2
        %s436 = smul.addr %s435, 8
        %s437 = scalar_lea.vmem %s12, %s436
        %p438 = scmp.lt.s32.totalorder %s26, 1
        %s439 = scalar_select %p438, %s26, 1
        %s440 = smul.addr %s439, 3
        %s441 = smul.addr %s440, 4
        %s442 = scalar_lea.vmem %s0, %s441
        %p443 = scmp.lt.s32.totalorder %s26, 1
        %s444 = scalar_select %p443, %s26, 1
        %s445 = smul.addr %s444, 2
        %s446 = smul.addr %s445, 8
        %s447 = scalar_lea.vmem %s1, %s446
        %p448 = scmp.lt.s32.totalorder %s26, 1
        %s449 = scalar_select %p448, %s26, 1
        %s450 = smul.addr %s449, 2
        %s451 = smul.addr %s450, 8
        %s452 = scalar_lea.vmem %s12, %s451
        %v454 = vld [vmem:[%s447] sm:$0xff]
        %v455 = vld [vmem:[%s447 + $0x8] sm:$0xff]
        %v456 = vld [vmem:[%s442] sm:$0xf]
        %v457 = vld [vmem:[%s442 + $0x4] sm:$0xf]
        %v458 = vld [vmem:[%s2] sm:$0xff]
        %v459 = vld [vmem:[%s2 + $0x8] sm:$0xff]
        %v460 = vld [vmem:[%s2 + $0x10] sm:$0xff]
        %v461 = vld [vmem:[%s2 + $0x18] sm:$0xff]
        %v462 = vld [vmem:[%s442 + $0x8] sm:$0x1]
        %s463 = scalar_lea.vmem %s2, 32
        %v464 = vld [vmem:[%s463] sm:$0xff]
        %v465 = vld [vmem:[%s463 + $0x8] sm:$0xff]
        %v466 = vld [vmem:[%s463 + $0x10] sm:$0xff]
        %v467 = vld [vmem:[%s463 + $0x18] sm:$0xff]
        %v471 = vunpack.c.l.b16 %v456
        %v472 = vunpack.c.l.b16 %v457
        %v473 = vunpack.c.l.b16 %v462
        %v474 = vpack.c.b16 %v472, %v471
        %v475 = vpack.c.b16 %v473, %v473
        %vm476 = vsmask.f32 7424
        %v478 = vshrl.u32 %v474, 16
        %v480 = vshll.u32 %v474, 16
        %v482 = vrot.slane %v480, 1
        %v483 = vor.u32 %v478, %v482
        %v485 = vshll.u32 %v475, 16
        %v487 = vrot.slane %v485, 1
        %v488 = vsel %vm476, %v483, %v487
        %v493 = vunpack.c.l.b16 %v464
        %v494 = vunpack.c.h.b16 %v464
        %v495 = vunpack.c.l.b16 %v465
        %v496 = vunpack.c.h.b16 %v465
        %v497 = vunpack.c.l.b16 %v466
        %v498 = vunpack.c.h.b16 %v466
        %v499 = vunpack.c.l.b16 %v467
        %v500 = vunpack.c.h.b16 %v467
        %v501 = vpack.c.b16 %v495, %v493
        %v502 = vpack.c.b16 %v496, %v494
        %v503 = vpack.c.b16 %v499, %v497
        %v504 = vpack.c.b16 %v500, %v498
        %vm509 = vcmask 261120
        %v511 = vsel %vm509, %v488, 0
        %513 = vmatpush.bf16.msra.mxu0 0
        %514 = vmatpush.bf16.msra.mxu0 0
        %515 = vmatpush.bf16.msra.mxu0 0
        %516 = vmatpush.bf16.msra.mxu0 0
        %517 = vmatpush.bf16.msra.mxu0 0
        %518 = vmatpush.bf16.msra.mxu0 0
        %519 = vmatpush.bf16.msra.mxu0 %v503
        %520 = vmatpush.bf16.msra.mxu0 %v501
        %521 = vmatmul.bf16.gmra.mxu0 %v511
        %v522 = vpop.f32.mrf.mxu0
        %v523 = vadd.f32 0.0, %v522
        %v524 = vpop.f32.mrf.mxu0
        %v525 = vadd.f32 0.0, %v524
        %526 = vdwg.mxu0
        %527 = vmatpush.bf16.msra.mxu0 0
        %528 = vmatpush.bf16.msra.mxu0 0
        %529 = vmatpush.bf16.msra.mxu0 0
        %530 = vmatpush.bf16.msra.mxu0 0
        %531 = vmatpush.bf16.msra.mxu0 0
        %532 = vmatpush.bf16.msra.mxu0 0
        %533 = vmatpush.bf16.msra.mxu0 %v504
        %534 = vmatpush.bf16.msra.mxu0 %v502
        %535 = vmatmul.bf16.gmra.mxu0 %v511
        %v536 = vpop.f32.mrf.mxu0
        %v537 = vadd.f32 0.0, %v536
        %v538 = vpop.f32.mrf.mxu0
        %v539 = vadd.f32 0.0, %v538
        %540 = vdwg.mxu0
        %v545 = vunpack.c.l.b16 %v458
        %v546 = vunpack.c.h.b16 %v458
        %v547 = vunpack.c.l.b16 %v459
        %v548 = vunpack.c.h.b16 %v459
        %v549 = vunpack.c.l.b16 %v460
        %v550 = vunpack.c.h.b16 %v460
        %v551 = vunpack.c.l.b16 %v461
        %v552 = vunpack.c.h.b16 %v461
        %v553 = vpack.c.b16 %v547, %v545
        %v554 = vpack.c.b16 %v548, %v546
        %v555 = vpack.c.b16 %v551, %v549
        %v556 = vpack.c.b16 %v552, %v550
        %v561 = vsel %vm509, %v474, 0
        %563 = vmatpush.bf16.msra.mxu0 0
        %564 = vmatpush.bf16.msra.mxu0 0
        %565 = vmatpush.bf16.msra.mxu0 0
        %566 = vmatpush.bf16.msra.mxu0 0
        %567 = vmatpush.bf16.msra.mxu0 0
        %568 = vmatpush.bf16.msra.mxu0 0
        %569 = vmatpush.bf16.msra.mxu0 %v555
        %570 = vmatpush.bf16.msra.mxu0 %v553
        %571 = vmatmul.bf16.gmra.mxu0 %v561
        %v572 = vpop.f32.mrf.mxu0
        %v573 = vadd.f32 %v523, %v572
        %v574 = vpop.f32.mrf.mxu0
        %v575 = vadd.f32 %v525, %v574
        %576 = vdwg.mxu0
        %577 = vmatpush.bf16.msra.mxu0 0
        %578 = vmatpush.bf16.msra.mxu0 0
        %579 = vmatpush.bf16.msra.mxu0 0
        %580 = vmatpush.bf16.msra.mxu0 0
        %581 = vmatpush.bf16.msra.mxu0 0
        %582 = vmatpush.bf16.msra.mxu0 0
        %583 = vmatpush.bf16.msra.mxu0 %v556
        %584 = vmatpush.bf16.msra.mxu0 %v554
        %585 = vmatmul.bf16.gmra.mxu0 %v561
        %v586 = vpop.f32.mrf.mxu0
        %v587 = vadd.f32 %v537, %v586
        %v588 = vpop.f32.mrf.mxu0
        %v589 = vadd.f32 %v539, %v588
        %590 = vdwg.mxu0
        %v591 = vld [vmem:[%s442] sm:$0xe]
        %s592 = scalar_lea.vmem %s2, 64
        %v593 = vld [vmem:[%s592] sm:$0xff]
        %v594 = vld [vmem:[%s592 + $0x8] sm:$0xff]
        %v595 = vld [vmem:[%s592 + $0x10] sm:$0xff]
        %v596 = vld [vmem:[%s592 + $0x18] sm:$0xff]
        %v598 = vunpack.c.l.b16 %v591
        %v599 = vpack.c.b16 %v472, %v598
        %vm600 = vcmask 1046528
        %v601 = vrot.slane %v599, 1
        %v602 = vrot.slane %v475, 1
        %v603 = vsel %vm600, %v601, %v602
        %v608 = vunpack.c.l.b16 %v593
        %v609 = vunpack.c.h.b16 %v593
        %v610 = vunpack.c.l.b16 %v594
        %v611 = vunpack.c.h.b16 %v594
        %v612 = vunpack.c.l.b16 %v595
        %v613 = vunpack.c.h.b16 %v595
        %v614 = vunpack.c.l.b16 %v596
        %v615 = vunpack.c.h.b16 %v596
        %v616 = vpack.c.b16 %v610, %v608
        %v617 = vpack.c.b16 %v611, %v609
        %v618 = vpack.c.b16 %v614, %v612
        %v619 = vpack.c.b16 %v615, %v613
        %v625 = vsel %vm509, %v603, 0
        %627 = vmatpush.bf16.msra.mxu0 0
        %628 = vmatpush.bf16.msra.mxu0 0
        %629 = vmatpush.bf16.msra.mxu0 0
        %630 = vmatpush.bf16.msra.mxu0 0
        %631 = vmatpush.bf16.msra.mxu0 0
        %632 = vmatpush.bf16.msra.mxu0 0
        %633 = vmatpush.bf16.msra.mxu0 %v618
        %634 = vmatpush.bf16.msra.mxu0 %v616
        %635 = vmatmul.bf16.gmra.mxu0 %v625
        %v636 = vpop.f32.mrf.mxu0
        %v637 = vadd.f32 0.0, %v636
        %v638 = vpop.f32.mrf.mxu0
        %v639 = vadd.f32 0.0, %v638
        %640 = vdwg.mxu0
        %641 = vmatpush.bf16.msra.mxu0 0
        %642 = vmatpush.bf16.msra.mxu0 0
        %643 = vmatpush.bf16.msra.mxu0 0
        %644 = vmatpush.bf16.msra.mxu0 0
        %645 = vmatpush.bf16.msra.mxu0 0
        %646 = vmatpush.bf16.msra.mxu0 0
        %647 = vmatpush.bf16.msra.mxu0 %v619
        %648 = vmatpush.bf16.msra.mxu0 %v617
        %649 = vmatmul.bf16.gmra.mxu0 %v625
        %v650 = vpop.f32.mrf.mxu0
        %v651 = vadd.f32 0.0, %v650
        %v652 = vpop.f32.mrf.mxu0
        %v653 = vadd.f32 0.0, %v652
        %654 = vdwg.mxu0
        %v655 = vadd.f32 %v573, %v637
        %v656 = vadd.f32 %v587, %v651
        %v657 = vadd.f32 %v575, %v639
        %v658 = vadd.f32 %v589, %v653
        %v659 = vld [vmem:[%s3] sm:$0x3]
        %v661 = vperm.slane %v659, 0
        %v662 = vperm.slane %v659, 1
        %v665 = vadd.f32 %v655, %v661
        %v666 = vadd.f32 %v656, %v662
        %v667 = vadd.f32 %v657, %v661
        %v668 = vadd.f32 %v658, %v662
        %v669 = vmax.f32 %v665, 0.0
        %v670 = vmax.f32 %v666, 0.0
        %v671 = vmax.f32 %v667, 0.0
        %v672 = vmax.f32 %v668, 0.0
        %v673 = vadd.f32 %v669, %v670
        %674 = vadd.xlane.f32.xlu0 %v673
        %v675 = vpop.xlane.xlu0 %674
        %v676 = vadd.f32 %v671, %v672
        %677 = vadd.xlane.f32.xlu0 %v676
        %v678 = vpop.xlane.xlu0 %677
        %v679 = vrcp.pop 256.0
        %v680 = vmul.f32 256.0, %v679
        %v681 = vsub.f32 1.0, %v680
        %v682 = vmul.f32 %v679, %v681
        %v683 = vadd.f32 %v679, %v682
        %vm684 = vweird.f32 %v679
        %v685 = vsel %vm684, %v679, %v683
        %v686 = vmul.f32 %v675, %v685
        %v687 = vmul.f32 %v678, %v685
        %v688 = vsub.f32 %v669, %v686
        %v689 = vsub.f32 %v670, %v686
        %v690 = vsub.f32 %v671, %v687
        %v691 = vsub.f32 %v672, %v687
        %v692 = vmul.f32 %v688, %v688
        %v693 = vmul.f32 %v689, %v689
        %v694 = vmul.f32 %v690, %v690
        %v695 = vmul.f32 %v691, %v691
        %v696 = vadd.f32 %v692, %v693
        %697 = vadd.xlane.f32.xlu0 %v696
        %v698 = vpop.xlane.xlu0 %697
        %v699 = vadd.f32 %v694, %v695
        %700 = vadd.xlane.f32.xlu0 %v699
        %v701 = vpop.xlane.xlu0 %700
        %v702 = vmul.f32 %v698, %v685
        %v703 = vmul.f32 %v701, %v685
        %v704 = vadd.f32 %v702, 1e-05
        %v705 = vadd.f32 %v703, 1e-05
        %v706 = vrsqrt.pop %v704
        %v707 = vmul.f32 %v706, %v704
        %v708 = vmul.f32 %v707, %v706
        %v709 = vmul.f32 0.5, %v708
        %v710 = vsub.f32 1.5, %v709
        %v711 = vmul.f32 %v706, %v710
        %vm712 = vweird.f32 %v704
        %vm713 = vweird.f32 %v706
        %vm714 = vmor %vm712, %vm713
        %v715 = vsel %vm714, %v706, %v711
        %v716 = vrsqrt.pop %v705
        %v717 = vmul.f32 %v716, %v705
        %v718 = vmul.f32 %v717, %v716
        %v719 = vmul.f32 0.5, %v718
        %v720 = vsub.f32 1.5, %v719
        %v721 = vmul.f32 %v716, %v720
        %vm722 = vweird.f32 %v705
        %vm723 = vweird.f32 %v716
        %vm724 = vmor %vm722, %vm723
        %v725 = vsel %vm724, %v716, %v721
        %v726 = vmul.f32 %v688, %v715
        %v727 = vmul.f32 %v689, %v715
        %v728 = vmul.f32 %v690, %v725
        %v729 = vmul.f32 %v691, %v725
        %v730 = vld [vmem:[%s4] sm:$0x3]
        %v732 = vperm.slane %v730, 0
        %v733 = vperm.slane %v730, 1
        %v736 = vmul.f32 %v726, %v732
        %v737 = vmul.f32 %v727, %v733
        %v738 = vmul.f32 %v728, %v732
        %v739 = vmul.f32 %v729, %v733
        %v740 = vld [vmem:[%s5] sm:$0x3]
        %v742 = vperm.slane %v740, 0
        %v743 = vperm.slane %v740, 1
        %v746 = vadd.f32 %v736, %v742
        %v747 = vadd.f32 %v737, %v743
        %v748 = vadd.f32 %v738, %v742
        %v749 = vadd.f32 %v739, %v743
        %751 = vset.pattern.permute.xlu0 0
        %752 = vperm.xlu0 %751, %v454
        %v753 = vpop.permute.xlu0 %752
        %756 = vset.pattern.permute.xlu0 0
        %757 = vperm.xlu0 %756, %v455
        %v758 = vpop.permute.xlu0 %757
        %v760 = vmul.f32 %v746, %v753
        %v761 = vmul.f32 %v747, %v753
        %v762 = vmul.f32 %v748, %v758
        %v763 = vmul.f32 %v749, %v758
        %v764 = vpack.c.bf16 %v761, %v760
        %v765 = vpack.c.bf16 %v763, %v762
        %766 = vst [vmem:[#allocation2] sm:$0xff] 0
        %767 = vst [vmem:[#allocation2 + $0x8] sm:$0xff] 0
        %768 = vst [vmem:[#allocation2 + $0x10] sm:$0x11] 0
        %vm769 = vsmask.f32 256
        %vm770 = vsmask.f32 4368
        %vm771 = vmor %vm769, %vm770
        %v773 = vshrl.u32 %v764, 16
        %v775 = vrot.slane %v773, 7
        %v776 = vshll.u32 %v764, 16
        %v778 = vor.u32 %v775, %v776
        %v779 = vrot.slane %v775, 4
        %v781 = vshrl.u32 %v765, 16
        %v783 = vrot.slane %v781, 7
        %v784 = vshll.u32 %v765, 16
        %v786 = vor.u32 %v783, %v784
        %v787 = vsel %vm771, %v779, %v786
        %v788 = vrot.slane %v783, 4
        %vm792 = vcmask 1043456
        %vm793 = vsmask.f32 7938
        %vm794 = vmand %vm792, %vm793
        %vm795 = vcmask 1047556
        %vm796 = vsmask.f32 7954
        %vm797 = vmand %vm795, %vm796
        %vm798 = vmor %vm797, %vm794
        %v799 = vld [vmem:[#allocation2] sm:$0xff]
        %v800 = vsel %vm798, %v778, %v799
        %801 = vst [vmem:[#allocation2] sm:$0xff] %v800
        %802 = vst [vmem:[#allocation2 + $0x8] sm:$0xff] %v787
        %vm803 = vcmask 1040384
        %vm804 = vmand %vm803, %vm769
        %vm805 = vcmask 1044484
        %vm806 = vsmask.f32 4352
        %vm807 = vmand %vm805, %vm806
        %vm808 = vmor %vm807, %vm804
        %v809 = vld [vmem:[#allocation2 + $0x10] sm:$0x11]
        %v810 = vsel %vm808, %v788, %v809
        %811 = vst [vmem:[#allocation2 + $0x10] sm:$0x11] %v810
        %v812 = vld [vmem:[#allocation2] sm:$0xff]
        %v813 = vld [vmem:[#allocation2 + $0x8] sm:$0xff]
        %v814 = vld [vmem:[#allocation4] sm:$0xff]
        %v815 = vld [vmem:[#allocation4 + $0x8] sm:$0xff]
        %v816 = vld [vmem:[#allocation4 + $0x10] sm:$0xff]
        %v817 = vld [vmem:[#allocation4 + $0x18] sm:$0xff]
        %v818 = vld [vmem:[#allocation4 + $0x20] sm:$0xff]
        %v819 = vld [vmem:[#allocation4 + $0x28] sm:$0xff]
        %v820 = vld [vmem:[#allocation4 + $0x30] sm:$0xff]
        %v821 = vld [vmem:[#allocation4 + $0x38] sm:$0xff]
        %v822 = vld [vmem:[#allocation4 + $0x40] sm:$0xff]
        %v823 = vld [vmem:[#allocation4 + $0x48] sm:$0xff]
        %v824 = vld [vmem:[#allocation4 + $0x50] sm:$0xff]
        %v825 = vld [vmem:[#allocation4 + $0x58] sm:$0xff]
        %v826 = vld [vmem:[#allocation4 + $0x60] sm:$0xff]
        %v827 = vld [vmem:[#allocation4 + $0x68] sm:$0xff]
        %v828 = vld [vmem:[#allocation4 + $0x70] sm:$0xff]
        %v829 = vld [vmem:[#allocation4 + $0x78] sm:$0xff]
        %v830 = vld [vmem:[#allocation4 + $0x80] sm:$0xff]
        %v831 = vld [vmem:[#allocation4 + $0x88] sm:$0xff]
        %v832 = vld [vmem:[#allocation4 + $0x90] sm:$0xff]
        %v833 = vld [vmem:[#allocation4 + $0x98] sm:$0xff]
        %v834 = vld [vmem:[#allocation4 + $0xa0] sm:$0xff]
        %v835 = vld [vmem:[#allocation4 + $0xa8] sm:$0xff]
        %v836 = vld [vmem:[#allocation4 + $0xb0] sm:$0xff]
        %v837 = vld [vmem:[#allocation4 + $0xb8] sm:$0xff]
        %v838 = vld [vmem:[#allocation4 + $0xc0] sm:$0xff]
        %v839 = vld [vmem:[#allocation4 + $0xc8] sm:$0xff]
        %v840 = vld [vmem:[#allocation4 + $0xd0] sm:$0xff]
        %v841 = vld [vmem:[#allocation4 + $0xd8] sm:$0xff]
        %v842 = vld [vmem:[#allocation4 + $0xe0] sm:$0xff]
        %v843 = vld [vmem:[#allocation4 + $0xe8] sm:$0xff]
        %v844 = vld [vmem:[#allocation4 + $0xf0] sm:$0xff]
        %v845 = vld [vmem:[#allocation4 + $0xf8] sm:$0xff]
        %v846 = vld [vmem:[#allocation2 + $0x10] sm:$0x11]
        %s847 = scalar_lea.vmem [#allocation4], 256
        %v848 = vld [vmem:[%s847] sm:$0xff]
        %v849 = vld [vmem:[%s847 + $0x8] sm:$0xff]
        %v850 = vld [vmem:[%s847 + $0x10] sm:$0xff]
        %v851 = vld [vmem:[%s847 + $0x18] sm:$0xff]
        %v852 = vld [vmem:[%s847 + $0x20] sm:$0xff]
        %v853 = vld [vmem:[%s847 + $0x28] sm:$0xff]
        %v854 = vld [vmem:[%s847 + $0x30] sm:$0xff]
        %v855 = vld [vmem:[%s847 + $0x38] sm:$0xff]
        %v856 = vld [vmem:[%s847 + $0x40] sm:$0xff]
        %v857 = vld [vmem:[%s847 + $0x48] sm:$0xff]
        %v858 = vld [vmem:[%s847 + $0x50] sm:$0xff]
        %v859 = vld [vmem:[%s847 + $0x58] sm:$0xff]
        %v860 = vld [vmem:[%s847 + $0x60] sm:$0xff]
        %v861 = vld [vmem:[%s847 + $0x68] sm:$0xff]
        %v862 = vld [vmem:[%s847 + $0x70] sm:$0xff]
        %v863 = vld [vmem:[%s847 + $0x78] sm:$0xff]
        %v864 = vld [vmem:[%s847 + $0x80] sm:$0xff]
        %v865 = vld [vmem:[%s847 + $0x88] sm:$0xff]
        %v866 = vld [vmem:[%s847 + $0x90] sm:$0xff]
        %v867 = vld [vmem:[%s847 + $0x98] sm:$0xff]
        %v868 = vld [vmem:[%s847 + $0xa0] sm:$0xff]
        %v869 = vld [vmem:[%s847 + $0xa8] sm:$0xff]
        %v870 = vld [vmem:[%s847 + $0xb0] sm:$0xff]
        %v871 = vld [vmem:[%s847 + $0xb8] sm:$0xff]
        %v872 = vld [vmem:[%s847 + $0xc0] sm:$0xff]
        %v873 = vld [vmem:[%s847 + $0xc8] sm:$0xff]
        %v874 = vld [vmem:[%s847 + $0xd0] sm:$0xff]
        %v875 = vld [vmem:[%s847 + $0xd8] sm:$0xff]
        %v876 = vld [vmem:[%s847 + $0xe0] sm:$0xff]
        %v877 = vld [vmem:[%s847 + $0xe8] sm:$0xff]
        %v878 = vld [vmem:[%s847 + $0xf0] sm:$0xff]
        %v879 = vld [vmem:[%s847 + $0xf8] sm:$0xff]
        %v883 = vunpack.c.l.b16 %v812
        %v884 = vunpack.c.h.b16 %v812
        %v885 = vunpack.c.l.b16 %v813
        %v886 = vunpack.c.h.b16 %v813
        %v887 = vunpack.c.l.b16 %v846
        %v888 = vunpack.c.h.b16 %v846
        %v889 = vpack.c.b16 %v885, %v883
        %v890 = vpack.c.b16 %v886, %v884
        %v891 = vpack.c.b16 %v887, %v887
        %v892 = vpack.c.b16 %v888, %v888
        %v894 = vshrl.u32 %v889, 16
        %v896 = vshll.u32 %v889, 16
        %v898 = vrot.slane %v896, 1
        %v899 = vor.u32 %v894, %v898
        %v901 = vshll.u32 %v891, 16
        %v903 = vrot.slane %v901, 1
        %v904 = vsel %vm476, %v899, %v903
        %v906 = vshrl.u32 %v890, 16
        %v908 = vshll.u32 %v890, 16
        %v910 = vrot.slane %v908, 1
        %v911 = vor.u32 %v906, %v910
        %v913 = vshll.u32 %v892, 16
        %v915 = vrot.slane %v913, 1
        %v916 = vsel %vm476, %v911, %v915
        %v951 = vunpack.c.l.b16 %v848
        %v952 = vunpack.c.h.b16 %v848
        %v953 = vunpack.c.l.b16 %v849
        %v954 = vunpack.c.h.b16 %v849
        %v955 = vunpack.c.l.b16 %v850
        %v956 = vunpack.c.h.b16 %v850
        %v957 = vunpack.c.l.b16 %v851
        %v958 = vunpack.c.h.b16 %v851
        %v959 = vunpack.c.l.b16 %v852
        %v960 = vunpack.c.h.b16 %v852
        %v961 = vunpack.c.l.b16 %v853
        %v962 = vunpack.c.h.b16 %v853
        %v963 = vunpack.c.l.b16 %v854
        %v964 = vunpack.c.h.b16 %v854
        %v965 = vunpack.c.l.b16 %v855
        %v966 = vunpack.c.h.b16 %v855
        %v967 = vunpack.c.l.b16 %v856
        %v968 = vunpack.c.h.b16 %v856
        %v969 = vunpack.c.l.b16 %v857
        %v970 = vunpack.c.h.b16 %v857
        %v971 = vunpack.c.l.b16 %v858
        %v972 = vunpack.c.h.b16 %v858
        %v973 = vunpack.c.l.b16 %v859
        %v974 = vunpack.c.h.b16 %v859
        %v975 = vunpack.c.l.b16 %v860
        %v976 = vunpack.c.h.b16 %v860
        %v977 = vunpack.c.l.b16 %v861
        %v978 = vunpack.c.h.b16 %v861
        %v979 = vunpack.c.l.b16 %v862
        %v980 = vunpack.c.h.b16 %v862
        %v981 = vunpack.c.l.b16 %v863
        %v982 = vunpack.c.h.b16 %v863
        %v983 = vunpack.c.l.b16 %v864
        %v984 = vunpack.c.h.b16 %v864
        %v985 = vunpack.c.l.b16 %v865
        %v986 = vunpack.c.h.b16 %v865
        %v987 = vunpack.c.l.b16 %v866
        %v988 = vunpack.c.h.b16 %v866
        %v989 = vunpack.c.l.b16 %v867
        %v990 = vunpack.c.h.b16 %v867
        %v991 = vunpack.c.l.b16 %v868
        %v992 = vunpack.c.h.b16 %v868
        %v993 = vunpack.c.l.b16 %v869
        %v994 = vunpack.c.h.b16 %v869
        %v995 = vunpack.c.l.b16 %v870
        %v996 = vunpack.c.h.b16 %v870
        %v997 = vunpack.c.l.b16 %v871
        %v998 = vunpack.c.h.b16 %v871
        %v999 = vunpack.c.l.b16 %v872
        %v1000 = vunpack.c.h.b16 %v872
        %v1001 = vunpack.c.l.b16 %v873
        %v1002 = vunpack.c.h.b16 %v873
        %v1003 = vunpack.c.l.b16 %v874
        %v1004 = vunpack.c.h.b16 %v874
        %v1005 = vunpack.c.l.b16 %v875
        %v1006 = vunpack.c.h.b16 %v875
        %v1007 = vunpack.c.l.b16 %v876
        %v1008 = vunpack.c.h.b16 %v876
        %v1009 = vunpack.c.l.b16 %v877
        %v1010 = vunpack.c.h.b16 %v877
        %v1011 = vunpack.c.l.b16 %v878
        %v1012 = vunpack.c.h.b16 %v878
        %v1013 = vunpack.c.l.b16 %v879
        %v1014 = vunpack.c.h.b16 %v879
        %v1015 = vpack.c.b16 %v953, %v951
        %v1016 = vpack.c.b16 %v954, %v952
        %v1017 = vpack.c.b16 %v957, %v955
        %v1018 = vpack.c.b16 %v958, %v956
        %v1019 = vpack.c.b16 %v961, %v959
        %v1020 = vpack.c.b16 %v962, %v960
        %v1021 = vpack.c.b16 %v965, %v963
        %v1022 = vpack.c.b16 %v966, %v964
        %v1023 = vpack.c.b16 %v969, %v967
        %v1024 = vpack.c.b16 %v970, %v968
        %v1025 = vpack.c.b16 %v973, %v971
        %v1026 = vpack.c.b16 %v974, %v972
        %v1027 = vpack.c.b16 %v977, %v975
        %v1028 = vpack.c.b16 %v978, %v976
        %v1029 = vpack.c.b16 %v981, %v979
        %v1030 = vpack.c.b16 %v982, %v980
        %v1031 = vpack.c.b16 %v985, %v983
        %v1032 = vpack.c.b16 %v986, %v984
        %v1033 = vpack.c.b16 %v989, %v987
        %v1034 = vpack.c.b16 %v990, %v988
        %v1035 = vpack.c.b16 %v993, %v991
        %v1036 = vpack.c.b16 %v994, %v992
        %v1037 = vpack.c.b16 %v997, %v995
        %v1038 = vpack.c.b16 %v998, %v996
        %v1039 = vpack.c.b16 %v1001, %v999
        %v1040 = vpack.c.b16 %v1002, %v1000
        %v1041 = vpack.c.b16 %v1005, %v1003
        %v1042 = vpack.c.b16 %v1006, %v1004
        %v1043 = vpack.c.b16 %v1009, %v1007
        %v1044 = vpack.c.b16 %v1010, %v1008
        %v1045 = vpack.c.b16 %v1013, %v1011
        %v1046 = vpack.c.b16 %v1014, %v1012
        %1079 = vmatpush.bf16.msra.mxu0 %v1029
        %1080 = vmatpush.bf16.msra.mxu0 %v1027
        %1081 = vmatpush.bf16.msra.mxu0 %v1025
        %1082 = vmatpush.bf16.msra.mxu0 %v1023
        %1083 = vmatpush.bf16.msra.mxu0 %v1021
        %1084 = vmatpush.bf16.msra.mxu0 %v1019
        %1085 = vmatpush.bf16.msra.mxu0 %v1017
        %1086 = vmatpush.bf16.msra.mxu0 %v1015
        %1087 = vmatmul.bf16.gmra.mxu0 %v904
        %v1088 = vpop.f32.mrf.mxu0
        %v1089 = vadd.f32 0.0, %v1088
        %v1090 = vpop.f32.mrf.mxu0
        %v1091 = vadd.f32 0.0, %v1090
        %1092 = vdwg.mxu0
        %1093 = vmatpush.bf16.msra.mxu0 %v1045
        %1094 = vmatpush.bf16.msra.mxu0 %v1043
        %1095 = vmatpush.bf16.msra.mxu0 %v1041
        %1096 = vmatpush.bf16.msra.mxu0 %v1039
        %1097 = vmatpush.bf16.msra.mxu0 %v1037
        %1098 = vmatpush.bf16.msra.mxu0 %v1035
        %1099 = vmatpush.bf16.msra.mxu0 %v1033
        %1100 = vmatpush.bf16.msra.mxu0 %v1031
        %1101 = vmatmul.bf16.gmra.mxu0 %v916
        %v1102 = vpop.f32.mrf.mxu0
        %v1103 = vadd.f32 %v1089, %v1102
        %v1104 = vpop.f32.mrf.mxu0
        %v1105 = vadd.f32 %v1091, %v1104
        %1106 = vdwg.mxu0
        %1107 = vmatpush.bf16.msra.mxu0 %v1030
        %1108 = vmatpush.bf16.msra.mxu0 %v1028
        %1109 = vmatpush.bf16.msra.mxu0 %v1026
        %1110 = vmatpush.bf16.msra.mxu0 %v1024
        %1111 = vmatpush.bf16.msra.mxu0 %v1022
        %1112 = vmatpush.bf16.msra.mxu0 %v1020
        %1113 = vmatpush.bf16.msra.mxu0 %v1018
        %1114 = vmatpush.bf16.msra.mxu0 %v1016
        %1115 = vmatmul.bf16.gmra.mxu0 %v904
        %v1116 = vpop.f32.mrf.mxu0
        %v1117 = vadd.f32 0.0, %v1116
        %v1118 = vpop.f32.mrf.mxu0
        %v1119 = vadd.f32 0.0, %v1118
        %1120 = vdwg.mxu0
        %1121 = vmatpush.bf16.msra.mxu0 %v1046
        %1122 = vmatpush.bf16.msra.mxu0 %v1044
        %1123 = vmatpush.bf16.msra.mxu0 %v1042
        %1124 = vmatpush.bf16.msra.mxu0 %v1040
        %1125 = vmatpush.bf16.msra.mxu0 %v1038
        %1126 = vmatpush.bf16.msra.mxu0 %v1036
        %1127 = vmatpush.bf16.msra.mxu0 %v1034
        %1128 = vmatpush.bf16.msra.mxu0 %v1032
        %1129 = vmatmul.bf16.gmra.mxu0 %v916
        %v1130 = vpop.f32.mrf.mxu0
        %v1131 = vadd.f32 %v1117, %v1130
        %v1132 = vpop.f32.mrf.mxu0
        %v1133 = vadd.f32 %v1119, %v1132
        %1134 = vdwg.mxu0
        %v1169 = vunpack.c.l.b16 %v814
        %v1170 = vunpack.c.h.b16 %v814
        %v1171 = vunpack.c.l.b16 %v815
        %v1172 = vunpack.c.h.b16 %v815
        %v1173 = vunpack.c.l.b16 %v816
        %v1174 = vunpack.c.h.b16 %v816
        %v1175 = vunpack.c.l.b16 %v817
        %v1176 = vunpack.c.h.b16 %v817
        %v1177 = vunpack.c.l.b16 %v818
        %v1178 = vunpack.c.h.b16 %v818
        %v1179 = vunpack.c.l.b16 %v819
        %v1180 = vunpack.c.h.b16 %v819
        %v1181 = vunpack.c.l.b16 %v820
        %v1182 = vunpack.c.h.b16 %v820
        %v1183 = vunpack.c.l.b16 %v821
        %v1184 = vunpack.c.h.b16 %v821
        %v1185 = vunpack.c.l.b16 %v822
        %v1186 = vunpack.c.h.b16 %v822
        %v1187 = vunpack.c.l.b16 %v823
        %v1188 = vunpack.c.h.b16 %v823
        %v1189 = vunpack.c.l.b16 %v824
        %v1190 = vunpack.c.h.b16 %v824
        %v1191 = vunpack.c.l.b16 %v825
        %v1192 = vunpack.c.h.b16 %v825
        %v1193 = vunpack.c.l.b16 %v826
        %v1194 = vunpack.c.h.b16 %v826
        %v1195 = vunpack.c.l.b16 %v827
        %v1196 = vunpack.c.h.b16 %v827
        %v1197 = vunpack.c.l.b16 %v828
        %v1198 = vunpack.c.h.b16 %v828
        %v1199 = vunpack.c.l.b16 %v829
        %v1200 = vunpack.c.h.b16 %v829
        %v1201 = vunpack.c.l.b16 %v830
        %v1202 = vunpack.c.h.b16 %v830
        %v1203 = vunpack.c.l.b16 %v831
        %v1204 = vunpack.c.h.b16 %v831
        %v1205 = vunpack.c.l.b16 %v832
        %v1206 = vunpack.c.h.b16 %v832
        %v1207 = vunpack.c.l.b16 %v833
        %v1208 = vunpack.c.h.b16 %v833
        %v1209 = vunpack.c.l.b16 %v834
        %v1210 = vunpack.c.h.b16 %v834
        %v1211 = vunpack.c.l.b16 %v835
        %v1212 = vunpack.c.h.b16 %v835
        %v1213 = vunpack.c.l.b16 %v836
        %v1214 = vunpack.c.h.b16 %v836
        %v1215 = vunpack.c.l.b16 %v837
        %v1216 = vunpack.c.h.b16 %v837
        %v1217 = vunpack.c.l.b16 %v838
        %v1218 = vunpack.c.h.b16 %v838
        %v1219 = vunpack.c.l.b16 %v839
        %v1220 = vunpack.c.h.b16 %v839
        %v1221 = vunpack.c.l.b16 %v840
        %v1222 = vunpack.c.h.b16 %v840
        %v1223 = vunpack.c.l.b16 %v841
        %v1224 = vunpack.c.h.b16 %v841
        %v1225 = vunpack.c.l.b16 %v842
        %v1226 = vunpack.c.h.b16 %v842
        %v1227 = vunpack.c.l.b16 %v843
        %v1228 = vunpack.c.h.b16 %v843
        %v1229 = vunpack.c.l.b16 %v844
        %v1230 = vunpack.c.h.b16 %v844
        %v1231 = vunpack.c.l.b16 %v845
        %v1232 = vunpack.c.h.b16 %v845
        %v1233 = vpack.c.b16 %v1171, %v1169
        %v1234 = vpack.c.b16 %v1172, %v1170
        %v1235 = vpack.c.b16 %v1175, %v1173
        %v1236 = vpack.c.b16 %v1176, %v1174
        %v1237 = vpack.c.b16 %v1179, %v1177
        %v1238 = vpack.c.b16 %v1180, %v1178
        %v1239 = vpack.c.b16 %v1183, %v1181
        %v1240 = vpack.c.b16 %v1184, %v1182
        %v1241 = vpack.c.b16 %v1187, %v1185
        %v1242 = vpack.c.b16 %v1188, %v1186
        %v1243 = vpack.c.b16 %v1191, %v1189
        %v1244 = vpack.c.b16 %v1192, %v1190
        %v1245 = vpack.c.b16 %v1195, %v1193
        %v1246 = vpack.c.b16 %v1196, %v1194
        %v1247 = vpack.c.b16 %v1199, %v1197
        %v1248 = vpack.c.b16 %v1200, %v1198
        %v1249 = vpack.c.b16 %v1203, %v1201
        %v1250 = vpack.c.b16 %v1204, %v1202
        %v1251 = vpack.c.b16 %v1207, %v1205
        %v1252 = vpack.c.b16 %v1208, %v1206
        %v1253 = vpack.c.b16 %v1211, %v1209
        %v1254 = vpack.c.b16 %v1212, %v1210
        %v1255 = vpack.c.b16 %v1215, %v1213
        %v1256 = vpack.c.b16 %v1216, %v1214
        %v1257 = vpack.c.b16 %v1219, %v1217
        %v1258 = vpack.c.b16 %v1220, %v1218
        %v1259 = vpack.c.b16 %v1223, %v1221
        %v1260 = vpack.c.b16 %v1224, %v1222
        %v1261 = vpack.c.b16 %v1227, %v1225
        %v1262 = vpack.c.b16 %v1228, %v1226
        %v1263 = vpack.c.b16 %v1231, %v1229
        %v1264 = vpack.c.b16 %v1232, %v1230
        %1297 = vmatpush.bf16.msra.mxu0 %v1247
        %1298 = vmatpush.bf16.msra.mxu0 %v1245
        %1299 = vmatpush.bf16.msra.mxu0 %v1243
        %1300 = vmatpush.bf16.msra.mxu0 %v1241
        %1301 = vmatpush.bf16.msra.mxu0 %v1239
        %1302 = vmatpush.bf16.msra.mxu0 %v1237
        %1303 = vmatpush.bf16.msra.mxu0 %v1235
        %1304 = vmatpush.bf16.msra.mxu0 %v1233
        %1305 = vmatmul.bf16.gmra.mxu0 %v889
        %v1306 = vpop.f32.mrf.mxu0
        %v1307 = vadd.f32 %v1103, %v1306
        %v1308 = vpop.f32.mrf.mxu0
        %v1309 = vadd.f32 %v1105, %v1308
        %1310 = vdwg.mxu0
        %1311 = vmatpush.bf16.msra.mxu0 %v1263
        %1312 = vmatpush.bf16.msra.mxu0 %v1261
        %1313 = vmatpush.bf16.msra.mxu0 %v1259
        %1314 = vmatpush.bf16.msra.mxu0 %v1257
        %1315 = vmatpush.bf16.msra.mxu0 %v1255
        %1316 = vmatpush.bf16.msra.mxu0 %v1253
        %1317 = vmatpush.bf16.msra.mxu0 %v1251
        %1318 = vmatpush.bf16.msra.mxu0 %v1249
        %1319 = vmatmul.bf16.gmra.mxu0 %v890
        %v1320 = vpop.f32.mrf.mxu0
        %v1321 = vadd.f32 %v1307, %v1320
        %v1322 = vpop.f32.mrf.mxu0
        %v1323 = vadd.f32 %v1309, %v1322
        %1324 = vdwg.mxu0
        %1325 = vmatpush.bf16.msra.mxu0 %v1248
        %1326 = vmatpush.bf16.msra.mxu0 %v1246
        %1327 = vmatpush.bf16.msra.mxu0 %v1244
        %1328 = vmatpush.bf16.msra.mxu0 %v1242
        %1329 = vmatpush.bf16.msra.mxu0 %v1240
        %1330 = vmatpush.bf16.msra.mxu0 %v1238
        %1331 = vmatpush.bf16.msra.mxu0 %v1236
        %1332 = vmatpush.bf16.msra.mxu0 %v1234
        %1333 = vmatmul.bf16.gmra.mxu0 %v889
        %v1334 = vpop.f32.mrf.mxu0
        %v1335 = vadd.f32 %v1131, %v1334
        %v1336 = vpop.f32.mrf.mxu0
        %v1337 = vadd.f32 %v1133, %v1336
        %1338 = vdwg.mxu0
        %1339 = vmatpush.bf16.msra.mxu0 %v1264
        %1340 = vmatpush.bf16.msra.mxu0 %v1262
        %1341 = vmatpush.bf16.msra.mxu0 %v1260
        %1342 = vmatpush.bf16.msra.mxu0 %v1258
        %1343 = vmatpush.bf16.msra.mxu0 %v1256
        %1344 = vmatpush.bf16.msra.mxu0 %v1254
        %1345 = vmatpush.bf16.msra.mxu0 %v1252
        %1346 = vmatpush.bf16.msra.mxu0 %v1250
        %1347 = vmatmul.bf16.gmra.mxu0 %v890
        %v1348 = vpop.f32.mrf.mxu0
        %v1349 = vadd.f32 %v1335, %v1348
        %v1350 = vpop.f32.mrf.mxu0
        %v1351 = vadd.f32 %v1337, %v1350
        %1352 = vdwg.mxu0
        %v1353 = vld [vmem:[#allocation2] sm:$0xee]
        %s1354 = scalar_lea.vmem [#allocation4], 512
        %v1355 = vld [vmem:[%s1354] sm:$0xff]
        %v1356 = vld [vmem:[%s1354 + $0x8] sm:$0xff]
        %v1357 = vld [vmem:[%s1354 + $0x10] sm:$0xff]
        %v1358 = vld [vmem:[%s1354 + $0x18] sm:$0xff]
        %v1359 = vld [vmem:[%s1354 + $0x20] sm:$0xff]
        %v1360 = vld [vmem:[%s1354 + $0x28] sm:$0xff]
        %v1361 = vld [vmem:[%s1354 + $0x30] sm:$0xff]
        %v1362 = vld [vmem:[%s1354 + $0x38] sm:$0xff]
        %v1363 = vld [vmem:[%s1354 + $0x40] sm:$0xff]
        %v1364 = vld [vmem:[%s1354 + $0x48] sm:$0xff]
        %v1365 = vld [vmem:[%s1354 + $0x50] sm:$0xff]
        %v1366 = vld [vmem:[%s1354 + $0x58] sm:$0xff]
        %v1367 = vld [vmem:[%s1354 + $0x60] sm:$0xff]
        %v1368 = vld [vmem:[%s1354 + $0x68] sm:$0xff]
        %v1369 = vld [vmem:[%s1354 + $0x70] sm:$0xff]
        %v1370 = vld [vmem:[%s1354 + $0x78] sm:$0xff]
        %v1371 = vld [vmem:[%s1354 + $0x80] sm:$0xff]
        %v1372 = vld [vmem:[%s1354 + $0x88] sm:$0xff]
        %v1373 = vld [vmem:[%s1354 + $0x90] sm:$0xff]
        %v1374 = vld [vmem:[%s1354 + $0x98] sm:$0xff]
        %v1375 = vld [vmem:[%s1354 + $0xa0] sm:$0xff]
        %v1376 = vld [vmem:[%s1354 + $0xa8] sm:$0xff]
        %v1377 = vld [vmem:[%s1354 + $0xb0] sm:$0xff]
        %v1378 = vld [vmem:[%s1354 + $0xb8] sm:$0xff]
        %v1379 = vld [vmem:[%s1354 + $0xc0] sm:$0xff]
        %v1380 = vld [vmem:[%s1354 + $0xc8] sm:$0xff]
        %v1381 = vld [vmem:[%s1354 + $0xd0] sm:$0xff]
        %v1382 = vld [vmem:[%s1354 + $0xd8] sm:$0xff]
        %v1383 = vld [vmem:[%s1354 + $0xe0] sm:$0xff]
        %v1384 = vld [vmem:[%s1354 + $0xe8] sm:$0xff]
        %v1385 = vld [vmem:[%s1354 + $0xf0] sm:$0xff]
        %v1386 = vld [vmem:[%s1354 + $0xf8] sm:$0xff]
        %v1388 = vunpack.c.l.b16 %v1353
        %v1389 = vunpack.c.h.b16 %v1353
        %v1390 = vpack.c.b16 %v885, %v1388
        %v1391 = vpack.c.b16 %v886, %v1389
        %v1392 = vrot.slane %v1390, 1
        %v1393 = vrot.slane %v891, 1
        %v1394 = vsel %vm600, %v1392, %v1393
        %v1395 = vrot.slane %v1391, 1
        %v1396 = vrot.slane %v892, 1
        %v1397 = vsel %vm600, %v1395, %v1396
        %v1432 = vunpack.c.l.b16 %v1355
        %v1433 = vunpack.c.h.b16 %v1355
        %v1434 = vunpack.c.l.b16 %v1356
        %v1435 = vunpack.c.h.b16 %v1356
        %v1436 = vunpack.c.l.b16 %v1357
        %v1437 = vunpack.c.h.b16 %v1357
        %v1438 = vunpack.c.l.b16 %v1358
        %v1439 = vunpack.c.h.b16 %v1358
        %v1440 = vunpack.c.l.b16 %v1359
        %v1441 = vunpack.c.h.b16 %v1359
        %v1442 = vunpack.c.l.b16 %v1360
        %v1443 = vunpack.c.h.b16 %v1360
        %v1444 = vunpack.c.l.b16 %v1361
        %v1445 = vunpack.c.h.b16 %v1361
        %v1446 = vunpack.c.l.b16 %v1362
        %v1447 = vunpack.c.h.b16 %v1362
        %v1448 = vunpack.c.l.b16 %v1363
        %v1449 = vunpack.c.h.b16 %v1363
        %v1450 = vunpack.c.l.b16 %v1364
        %v1451 = vunpack.c.h.b16 %v1364
        %v1452 = vunpack.c.l.b16 %v1365
        %v1453 = vunpack.c.h.b16 %v1365
        %v1454 = vunpack.c.l.b16 %v1366
        %v1455 = vunpack.c.h.b16 %v1366
        %v1456 = vunpack.c.l.b16 %v1367
        %v1457 = vunpack.c.h.b16 %v1367
        %v1458 = vunpack.c.l.b16 %v1368
        %v1459 = vunpack.c.h.b16 %v1368
        %v1460 = vunpack.c.l.b16 %v1369
        %v1461 = vunpack.c.h.b16 %v1369
        %v1462 = vunpack.c.l.b16 %v1370
        %v1463 = vunpack.c.h.b16 %v1370
        %v1464 = vunpack.c.l.b16 %v1371
        %v1465 = vunpack.c.h.b16 %v1371
        %v1466 = vunpack.c.l.b16 %v1372
        %v1467 = vunpack.c.h.b16 %v1372
        %v1468 = vunpack.c.l.b16 %v1373
        %v1469 = vunpack.c.h.b16 %v1373
        %v1470 = vunpack.c.l.b16 %v1374
        %v1471 = vunpack.c.h.b16 %v1374
        %v1472 = vunpack.c.l.b16 %v1375
        %v1473 = vunpack.c.h.b16 %v1375
        %v1474 = vunpack.c.l.b16 %v1376
        %v1475 = vunpack.c.h.b16 %v1376
        %v1476 = vunpack.c.l.b16 %v1377
        %v1477 = vunpack.c.h.b16 %v1377
        %v1478 = vunpack.c.l.b16 %v1378
        %v1479 = vunpack.c.h.b16 %v1378
        %v1480 = vunpack.c.l.b16 %v1379
        %v1481 = vunpack.c.h.b16 %v1379
        %v1482 = vunpack.c.l.b16 %v1380
        %v1483 = vunpack.c.h.b16 %v1380
        %v1484 = vunpack.c.l.b16 %v1381
        %v1485 = vunpack.c.h.b16 %v1381
        %v1486 = vunpack.c.l.b16 %v1382
        %v1487 = vunpack.c.h.b16 %v1382
        %v1488 = vunpack.c.l.b16 %v1383
        %v1489 = vunpack.c.h.b16 %v1383
        %v1490 = vunpack.c.l.b16 %v1384
        %v1491 = vunpack.c.h.b16 %v1384
        %v1492 = vunpack.c.l.b16 %v1385
        %v1493 = vunpack.c.h.b16 %v1385
        %v1494 = vunpack.c.l.b16 %v1386
        %v1495 = vunpack.c.h.b16 %v1386
        %v1496 = vpack.c.b16 %v1434, %v1432
        %v1497 = vpack.c.b16 %v1435, %v1433
        %v1498 = vpack.c.b16 %v1438, %v1436
        %v1499 = vpack.c.b16 %v1439, %v1437
        %v1500 = vpack.c.b16 %v1442, %v1440
        %v1501 = vpack.c.b16 %v1443, %v1441
        %v1502 = vpack.c.b16 %v1446, %v1444
        %v1503 = vpack.c.b16 %v1447, %v1445
        %v1504 = vpack.c.b16 %v1450, %v1448
        %v1505 = vpack.c.b16 %v1451, %v1449
        %v1506 = vpack.c.b16 %v1454, %v1452
        %v1507 = vpack.c.b16 %v1455, %v1453
        %v1508 = vpack.c.b16 %v1458, %v1456
        %v1509 = vpack.c.b16 %v1459, %v1457
        %v1510 = vpack.c.b16 %v1462, %v1460
        %v1511 = vpack.c.b16 %v1463, %v1461
        %v1512 = vpack.c.b16 %v1466, %v1464
        %v1513 = vpack.c.b16 %v1467, %v1465
        %v1514 = vpack.c.b16 %v1470, %v1468
        %v1515 = vpack.c.b16 %v1471, %v1469
        %v1516 = vpack.c.b16 %v1474, %v1472
        %v1517 = vpack.c.b16 %v1475, %v1473
        %v1518 = vpack.c.b16 %v1478, %v1476
        %v1519 = vpack.c.b16 %v1479, %v1477
        %v1520 = vpack.c.b16 %v1482, %v1480
        %v1521 = vpack.c.b16 %v1483, %v1481
        %v1522 = vpack.c.b16 %v1486, %v1484
        %v1523 = vpack.c.b16 %v1487, %v1485
        %v1524 = vpack.c.b16 %v1490, %v1488
        %v1525 = vpack.c.b16 %v1491, %v1489
        %v1526 = vpack.c.b16 %v1494, %v1492
        %v1527 = vpack.c.b16 %v1495, %v1493
        %1560 = vmatpush.bf16.msra.mxu0 %v1510
        %1561 = vmatpush.bf16.msra.mxu0 %v1508
        %1562 = vmatpush.bf16.msra.mxu0 %v1506
        %1563 = vmatpush.bf16.msra.mxu0 %v1504
        %1564 = vmatpush.bf16.msra.mxu0 %v1502
        %1565 = vmatpush.bf16.msra.mxu0 %v1500
        %1566 = vmatpush.bf16.msra.mxu0 %v1498
        %1567 = vmatpush.bf16.msra.mxu0 %v1496
        %1568 = vmatmul.bf16.gmra.mxu0 %v1394
        %v1569 = vpop.f32.mrf.mxu0
        %v1570 = vadd.f32 0.0, %v1569
        %v1571 = vpop.f32.mrf.mxu0
        %v1572 = vadd.f32 0.0, %v1571
        %1573 = vdwg.mxu0
        %1574 = vmatpush.bf16.msra.mxu0 %v1526
        %1575 = vmatpush.bf16.msra.mxu0 %v1524
        %1576 = vmatpush.bf16.msra.mxu0 %v1522
        %1577 = vmatpush.bf16.msra.mxu0 %v1520
        %1578 = vmatpush.bf16.msra.mxu0 %v1518
        %1579 = vmatpush.bf16.msra.mxu0 %v1516
        %1580 = vmatpush.bf16.msra.mxu0 %v1514
        %1581 = vmatpush.bf16.msra.mxu0 %v1512
        %1582 = vmatmul.bf16.gmra.mxu0 %v1397
        %v1583 = vpop.f32.mrf.mxu0
        %v1584 = vadd.f32 %v1570, %v1583
        %v1585 = vpop.f32.mrf.mxu0
        %v1586 = vadd.f32 %v1572, %v1585
        %1587 = vdwg.mxu0
        %1588 = vmatpush.bf16.msra.mxu0 %v1511
        %1589 = vmatpush.bf16.msra.mxu0 %v1509
        %1590 = vmatpush.bf16.msra.mxu0 %v1507
        %1591 = vmatpush.bf16.msra.mxu0 %v1505
        %1592 = vmatpush.bf16.msra.mxu0 %v1503
        %1593 = vmatpush.bf16.msra.mxu0 %v1501
        %1594 = vmatpush.bf16.msra.mxu0 %v1499
        %1595 = vmatpush.bf16.msra.mxu0 %v1497
        %1596 = vmatmul.bf16.gmra.mxu0 %v1394
        %v1597 = vpop.f32.mrf.mxu0
        %v1598 = vadd.f32 0.0, %v1597
        %v1599 = vpop.f32.mrf.mxu0
        %v1600 = vadd.f32 0.0, %v1599
        %1601 = vdwg.mxu0
        %1602 = vmatpush.bf16.msra.mxu0 %v1527
        %1603 = vmatpush.bf16.msra.mxu0 %v1525
        %1604 = vmatpush.bf16.msra.mxu0 %v1523
        %1605 = vmatpush.bf16.msra.mxu0 %v1521
        %1606 = vmatpush.bf16.msra.mxu0 %v1519
        %1607 = vmatpush.bf16.msra.mxu0 %v1517
        %1608 = vmatpush.bf16.msra.mxu0 %v1515
        %1609 = vmatpush.bf16.msra.mxu0 %v1513
        %1610 = vmatmul.bf16.gmra.mxu0 %v1397
        %v1611 = vpop.f32.mrf.mxu0
        %v1612 = vadd.f32 %v1598, %v1611
        %v1613 = vpop.f32.mrf.mxu0
        %v1614 = vadd.f32 %v1600, %v1613
        %1615 = vdwg.mxu0
        %v1616 = vadd.f32 %v1321, %v1584
        %v1617 = vadd.f32 %v1349, %v1612
        %v1618 = vadd.f32 %v1323, %v1586
        %v1619 = vadd.f32 %v1351, %v1614
        %v1620 = vld [vmem:[%s7] sm:$0x3]
        %v1622 = vperm.slane %v1620, 0
        %v1623 = vperm.slane %v1620, 1
        %v1626 = vadd.f32 %v1616, %v1622
        %v1627 = vadd.f32 %v1617, %v1623
        %v1628 = vadd.f32 %v1618, %v1622
        %v1629 = vadd.f32 %v1619, %v1623
        %v1630 = vmax.f32 %v1626, 0.0
        %v1631 = vmax.f32 %v1627, 0.0
        %v1632 = vmax.f32 %v1628, 0.0
        %v1633 = vmax.f32 %v1629, 0.0
        %v1634 = vadd.f32 %v1630, %v1631
        %1635 = vadd.xlane.f32.xlu0 %v1634
        %v1636 = vpop.xlane.xlu0 %1635
        %v1637 = vadd.f32 %v1632, %v1633
        %1638 = vadd.xlane.f32.xlu0 %v1637
        %v1639 = vpop.xlane.xlu0 %1638
        %v1640 = vmul.f32 %v1636, %v685
        %v1641 = vmul.f32 %v1639, %v685
        %v1642 = vsub.f32 %v1630, %v1640
        %v1643 = vsub.f32 %v1631, %v1640
        %v1644 = vsub.f32 %v1632, %v1641
        %v1645 = vsub.f32 %v1633, %v1641
        %v1646 = vmul.f32 %v1642, %v1642
        %v1647 = vmul.f32 %v1643, %v1643
        %v1648 = vmul.f32 %v1644, %v1644
        %v1649 = vmul.f32 %v1645, %v1645
        %v1650 = vadd.f32 %v1646, %v1647
        %1651 = vadd.xlane.f32.xlu0 %v1650
        %v1652 = vpop.xlane.xlu0 %1651
        %v1653 = vadd.f32 %v1648, %v1649
        %1654 = vadd.xlane.f32.xlu0 %v1653
        %v1655 = vpop.xlane.xlu0 %1654
        %v1656 = vmul.f32 %v1652, %v685
        %v1657 = vmul.f32 %v1655, %v685
        %v1658 = vadd.f32 %v1656, 1e-05
        %v1659 = vadd.f32 %v1657, 1e-05
        %v1660 = vrsqrt.pop %v1658
        %v1661 = vmul.f32 %v1660, %v1658
        %v1662 = vmul.f32 %v1661, %v1660
        %v1663 = vmul.f32 0.5, %v1662
        %v1664 = vsub.f32 1.5, %v1663
        %v1665 = vmul.f32 %v1660, %v1664
        %vm1666 = vweird.f32 %v1658
        %vm1667 = vweird.f32 %v1660
        %vm1668 = vmor %vm1666, %vm1667
        %v1669 = vsel %vm1668, %v1660, %v1665
        %v1670 = vrsqrt.pop %v1659
        %v1671 = vmul.f32 %v1670, %v1659
        %v1672 = vmul.f32 %v1671, %v1670
        %v1673 = vmul.f32 0.5, %v1672
        %v1674 = vsub.f32 1.5, %v1673
        %v1675 = vmul.f32 %v1670, %v1674
        %vm1676 = vweird.f32 %v1659
        %vm1677 = vweird.f32 %v1670
        %vm1678 = vmor %vm1676, %vm1677
        %v1679 = vsel %vm1678, %v1670, %v1675
        %v1680 = vmul.f32 %v1642, %v1669
        %v1681 = vmul.f32 %v1643, %v1669
        %v1682 = vmul.f32 %v1644, %v1679
        %v1683 = vmul.f32 %v1645, %v1679
        %v1684 = vld [vmem:[%s8] sm:$0x3]
        %v1686 = vperm.slane %v1684, 0
        %v1687 = vperm.slane %v1684, 1
        %v1690 = vmul.f32 %v1680, %v1686
        %v1691 = vmul.f32 %v1681, %v1687
        %v1692 = vmul.f32 %v1682, %v1686
        %v1693 = vmul.f32 %v1683, %v1687
        %v1694 = vld [vmem:[%s9] sm:$0x3]
        %v1696 = vperm.slane %v1694, 0
        %v1697 = vperm.slane %v1694, 1
        %v1700 = vadd.f32 %v1690, %v1696
        %v1701 = vadd.f32 %v1691, %v1697
        %v1702 = vadd.f32 %v1692, %v1696
        %v1703 = vadd.f32 %v1693, %v1697
        %v1704 = vmul.f32 %v1700, %v753
        %v1705 = vmul.f32 %v1701, %v753
        %v1706 = vmul.f32 %v1702, %v758
        %v1707 = vmul.f32 %v1703, %v758
        %v1708 = vld [vmem:[%s10] sm:$0x3]
        %v1710 = vperm.slane %v1708, 0
        %v1711 = vperm.slane %v1708, 1
        %v1714 = vmul.f32 %v1704, %v1710
        %v1715 = vmul.f32 %v1705, %v1711
        %v1716 = vmul.f32 %v1706, %v1710
        %v1717 = vmul.f32 %v1707, %v1711
        %v1718 = vadd.f32 %v1714, %v1715
        %1719 = vadd.xlane.f32.xlu0 %v1718
        %v1720 = vpop.xlane.xlu0 %1719
        %v1721 = vadd.f32 %v1716, %v1717
        %1722 = vadd.xlane.f32.xlu0 %v1721
        %v1723 = vpop.xlane.xlu0 %1722
        %v1724 = vld [vmem:[#allocation3] sm:$0x1]
        %v1726 = vperm.slane %v1724, 0
        %v1728 = vadd.f32 %v1720, %v1726
        %v1729 = vadd.f32 %v1723, %v1726
        %v1730 = vmul.f32 %v1728, %v454
        %v1731 = vmul.f32 %v1729, %v455
        %vm1732 = vcmask 7168
        %1733 = vst.msk [vmem:[%s452] sm:$0xff] %vm1732, %v1730
        %1734 = vst.msk [vmem:[%s452 + $0x8] sm:$0xff] %vm1732, %v1731
        %p1735 = scmp.lt.s32.totalorder %s26, 1
        %s1736 = scalar_select %p1735, %s26, 1
        %s1737 = smul.addr %s1736, 2
        %s1738 = smul.addr %s1737, 8
        %s1739 = scalar_lea.vmem %s12, %s1738
        // Predicated region
        $region73: #{_lambda_.1} parent=67 // pred_check
          %p1740 = pneg %p306
        $region74: #{_lambda_.1} parent=67 // pred_check_branch
          %1742 = sbr.rel (%p1740) target = $region76
        $region75: #{_lambda_.1} parent=67 // pred_region
          _
        $region76: #{_lambda_.1} parent=67 // pred_fallthru
          _
      $region68: #{_lambda_.1} parent=5 // pred_fallthru
        _
      %p1743 = scmp.le.s32.totalorder 2, %s21
      // Predicated region
      $region77: #{_lambda_.1} parent=5 // pred_check
        %p1744 = pneg %p1743
      $region78: #{_lambda_.1} parent=5 // pred_check_branch
        %1746 = sbr.rel (%p1744) target = $region80
      $region79: #{_lambda_.1} parent=5 // pred_region
        %s1747 = ssub.s32 %s21, 2
        // Predicated region
        $region81: #{_lambda_.1} parent=79 // pred_check
          %p1748 = pneg %p312
        $region82: #{_lambda_.1} parent=79 // pred_check_branch
          %1750 = sbr.rel (%p1748) target = $region84
        $region83: #{_lambda_.1} parent=79 // pred_region
          %p1751 = scmp.lt.s32.totalorder %s27, 1
          %s1752 = scalar_select %p1751, %s27, 1
          %s1753 = smul.addr %s1752, 2
          %s1754 = smul.addr %s1753, 8
          %s1755 = scalar_lea.vmem %s12, %s1754
        $region84: #{_lambda_.1} parent=79 // pred_fallthru
          _
      $region80: #{_lambda_.1} parent=5 // pred_fallthru
        _
    $region6: #{_lambda_.1} parent=1 // loop_footer
      %s25 = sadd.s32 1, %s21
    $region7: #{_lambda_.1} parent=1 // loop_footer_branch
      %20 = sbr.rel target = $region3
    $region8: #{_lambda_.1} parent=1 // loop_exit
      _
    %1756 = vsyncpa [#allocation5], 1
    %s1757 = scalar_lea.sflag [#allocation5], 1
    %1758 = vsyncpa %s1757, 1

</llo_original>
